<compile_context>
chip_gen: v7x
topology: tpu7x:2x2x1
jax: 0.10.0
libtpu: 0.0.40
codegen_flags: <defaults>
</compile_context>

<pallas_src>
import functools

import jax
import jax.numpy as jnp
from jax.experimental import pallas as pl
from jax.experimental.pallas import tpu as pltpu


def _round_up(x, m):
    return ((x + m - 1) // m) * m


def _tpu_config():
    """Returns (vmem_budget_bytes, vmem_limit_bytes, num_cores, bf16_vpu)."""
    gen = None
    try:
        kind = jax.devices()[0].device_kind.lower()
        for g in (7, 6, 5, 4, 3, 2):
            if str(g) in kind:
                gen = g
                break
    except Exception:
        gen = None
    if gen is not None and gen >= 7:
        # v7x: 64 MiB physical / 32 MiB default-scoped VMEM per TC, 2 TCs.
        return 24 * 1024 * 1024, 32 * 1024 * 1024, 2, True
    if gen == 6:
        # v6e: 128 MiB VMEM, 1 TC, bf16 VPU/EUP.
        return 64 * 1024 * 1024, 100 * 1024 * 1024, 1, True
    if gen == 5:
        # v5e/v5p: 128 MiB VMEM, 1 TC, no bf16 VPU/EUP.
        return 64 * 1024 * 1024, 100 * 1024 * 1024, 1, False
    # Unknown / older generation: conservative (v7x-like) sizing.
    return 24 * 1024 * 1024, 32 * 1024 * 1024, 1, False


def _pick_batch_tile(S, Dq, Dc, Dq_out, S_out, itemsize, sublane,
                     vmem_budget_bytes, max_tile=1024,
                     single_buffer_weights=True):
    """Largest batch tile whose real VMEM-tiled footprint fits the budget.

    Counts each block at its tiled size (last dim rounded to 128 lanes,
    second-to-last to the dtype sublane), the pinned weight blocks, x2 for the
    double-buffered streamed blocks, and the in-kernel f32 intermediates.
    """
    ru = _round_up
    wbuf = 1 if single_buffer_weights else 2
    fixed = wbuf * itemsize * (ru(Dq, sublane) * ru(Dc, 128)     # w_in.T
                               + ru(Dc, sublane) * Dq_out        # w_out[:, :Dc].T
                               + ru(Dq, sublane) * Dq_out)       # w_out[:, Dc:].T
    # Per batch row, streamed blocks (double-buffered by the pipeline).
    stream = 2 * (ru(Dq, 128) * itemsize                         # h
                  + ru(S, sublane) * ru(Dc, 128) * itemsize      # context
                  + ru(S, 128) * 4                               # int32 mask
                  + Dq_out * itemsize                            # h_tilde out
                  + S_out * itemsize)                            # attn out
    # In-kernel intermediates (f32 worst case): ctx*target / ctx*attn products
    # dominate, plus the pre-activation and softmax rows.
    interm = (ru(S, 8) * ru(Dc, 128) * 4
              + Dq_out * 4
              + 2 * S_out * 4)
    per_row = stream + interm
    bt = (vmem_budget_bytes - fixed) // max(per_row, 1)
    bt = max(sublane, min(max_tile, bt))
    return (bt // sublane) * sublane


def _softdot_kernel(h_ref, ctx_ref, mask_ref, w_in_t_ref, w_out_c_t_ref,
                    w_out_h_t_ref, h_tilde_ref, attn_ref, *, f32_elementwise):
    h = h_ref[...]                               # (bt, Dq)    native dtype
    ctx = ctx_ref[...]                           # (bt, S, Dc) native dtype
    mask = mask_ref[...] != 0                    # (bt, S)     bool
    S = ctx_ref.shape[1]
    S_out = attn_ref.shape[1]

    # linear_in on the MXU: pre-transposed weight -> plain (M,K)x(K,N),
    # matched native-dtype operands, f32 accumulation.
    target = jnp.dot(h, w_in_t_ref[...],
                     preferred_element_type=jnp.float32)         # (bt, Dc) f32

    if f32_elementwise:
        ctx_e = ctx.astype(jnp.float32)
        tgt_e = target
    else:
        # bf16-capable VPU (v6e/v7x): keep the large elementwise products in
        # the native dtype; accumulate the reductions in f32.
        ctx_e = ctx
        tgt_e = target.astype(ctx.dtype)

    # Attention logits: batched mat-vec as VPU multiply + XLU lane-reduce over
    # Dc (an N=1 MXU matmul would waste the MXU).
    logits = jnp.sum((ctx_e * tgt_e[:, None, :]).astype(jnp.float32),
                     axis=-1)                                     # (bt, S) f32

    # Masked softmax over seq.  Finite fill (not -inf): fully-masked rows
    # degrade to a finite uniform distribution instead of NaN.
    logits = jnp.where(mask, jnp.float32(-1e30), logits)
    if S_out != S:
        # Pad the seq axis to the lane-dense output width; padded columns get
        # the same fill so they softmax to ~0 for any partially-unmasked row.
        pad = jnp.full((logits.shape[0], S_out - S), -1e30, jnp.float32)
        logits = jnp.concatenate([logits, pad], axis=-1)          # (bt, S_out)
    m = jnp.max(logits, axis=-1, keepdims=True)
    e = jnp.exp(logits - m)
    denom = jnp.sum(e, axis=-1, keepdims=True)
    attn = e * pl.reciprocal(denom, approx=True)   # divide on the EUP slot

    # weighted_context: VPU multiply + sublane reduce over S.
    attn_s = attn[:, :S]
    attn_e = attn_s if f32_elementwise else attn_s.astype(ctx.dtype)
    weighted = jnp.sum((ctx_e * attn_e[:, :, None]).astype(jnp.float32),
                       axis=1)                                    # (bt, Dc) f32

    # linear_out + tanh.  The concat-matmul was split wrapper-side into the
    # two column blocks of w_out (pre-transposed, output features padded to
    # x128 -> lane-dense h_tilde stores and full-width MXU N).
    w_dtype = w_out_c_t_ref.dtype
    pre = jnp.dot(weighted.astype(w_dtype), w_out_c_t_ref[...],
                  preferred_element_type=jnp.float32)
    pre = pre + jnp.dot(h, w_out_h_t_ref[...],
                        preferred_element_type=jnp.float32)

    h_tilde_ref[...] = jnp.tanh(pre).astype(h_tilde_ref.dtype)
    attn_ref[...] = attn.astype(attn_ref.dtype)


def soft_dot_attention(h, context, mask, w_in, w_out, *, block_b=None):
    """Pallas SoftDotAttention forward (output_tilde=True, output_prob=True).

    Returns (h_tilde (B, Dq), attn (B, S)) in the input dtype, matching the
    PyTorch module's interface.
    """
    B, Dq = h.shape
    Bc, S, Dc = context.shape
    assert Bc == B
    assert w_in.shape == (Dc, Dq)
    assert w_out.shape == (Dq, Dq + Dc)

    if mask is None:
        mask = jnp.zeros((B, S), dtype=jnp.int32)
    mask = mask.astype(jnp.int32)

    dtype = h.dtype
    itemsize = jnp.dtype(dtype).itemsize
    sublane = max(8, 32 // itemsize)               # 8 f32 / 16 bf16 / 32 int8
    vmem_budget, vmem_limit, num_cores, bf16_vpu = _tpu_config()
    f32_elementwise = (jnp.dtype(dtype) == jnp.float32) or not bf16_vpu

    # Pre-split + pre-transposed linear_out (y = x @ W.T): columns [0:Dc] hit
    # weighted_context, columns [Dc:] hit h.  Output-feature dim padded to
    # x128 (lane-dense h_tilde stores).  Weights cast to the activation dtype
    # (matched MXU operands; bf16 deployments halve pinned-weight VMEM).
    # NOTE: the context stream / Dc is NOT padded -- it dominates HBM traffic.
    Dq_out = _round_up(Dq, 128)
    S_out = _round_up(S, 128)
    w_in_t = jnp.asarray(w_in, dtype).T                           # (Dq, Dc)
    w_out_c_t = jnp.asarray(w_out[:, :Dc], dtype).T               # (Dc, Dq)
    w_out_h_t = jnp.asarray(w_out[:, Dc:], dtype).T               # (Dq, Dq)
    if Dq_out != Dq:
        w_out_c_t = jnp.pad(w_out_c_t, ((0, 0), (0, Dq_out - Dq)))
        w_out_h_t = jnp.pad(w_out_h_t, ((0, 0), (0, Dq_out - Dq)))

    if block_b is None:
        block_b = _pick_batch_tile(S, Dq, Dc, Dq_out, S_out, itemsize, sublane,
                                   vmem_budget)
    bt = max(sublane, _round_up(min(block_b, _round_up(B, sublane)), sublane))
    if num_cores >= 2 and B >= 2 * sublane:
        # Guarantee >= 2 grid steps so the "parallel" batch axis can actually
        # be sharded across the two TensorCores (v7x).
        bt = min(bt, _round_up(-(-B // 2), sublane))
    Bp = _round_up(B, bt)

    if Bp != B:
        pad = Bp - B
        h = jnp.pad(h, ((0, pad), (0, 0)))
        context = jnp.pad(context, ((0, pad), (0, 0), (0, 0)))
        # Padded rows are fully masked; the finite fill keeps them NaN-free.
        mask = jnp.pad(mask, ((0, pad), (0, 0)), constant_values=1)

    kernel = functools.partial(_softdot_kernel,
                               f32_elementwise=f32_elementwise)
    grid = (Bp // bt,)

    def build(weight_pipeline_mode):
        wkw = ({} if weight_pipeline_mode is None
               else {"pipeline_mode": weight_pipeline_mode})
        return pl.pallas_call(
            kernel,
            out_shape=(jax.ShapeDtypeStruct((Bp, Dq_out), dtype),
                       jax.ShapeDtypeStruct((Bp, S_out), dtype)),
            grid=grid,
            in_specs=[
                pl.BlockSpec((bt, Dq), lambda i: (i, 0)),           # h tile
                pl.BlockSpec((bt, S, Dc), lambda i: (i, 0, 0)),     # context tile
                pl.BlockSpec((bt, S), lambda i: (i, 0)),            # mask tile
                pl.BlockSpec((Dq, Dc), lambda i: (0, 0), **wkw),      # w_in.T
                pl.BlockSpec((Dc, Dq_out), lambda i: (0, 0), **wkw),  # w_out[:, :Dc].T
                pl.BlockSpec((Dq, Dq_out), lambda i: (0, 0), **wkw),  # w_out[:, Dc:].T
            ],
            out_specs=(
                pl.BlockSpec((bt, Dq_out), lambda i: (i, 0)),       # h_tilde (x128)
                pl.BlockSpec((bt, S_out), lambda i: (i, 0)),        # attn (x128)
            ),
            compiler_params=pltpu.CompilerParams(
                dimension_semantics=("parallel",),
                vmem_limit_bytes=vmem_limit),
        )

    args = (h, context, mask, w_in_t, w_out_c_t, w_out_h_t)
    try:
        # Grid-invariant weights: single-buffer them (double-buffering a
        # constant block only duplicates weight VMEM; matters most on v7x).
        h_tilde_pad, attn_pad = build(pl.Buffered(1))(*args)
    except Exception:
        # Fallback for jax versions without per-BlockSpec pipeline modes.
        h_tilde_pad, attn_pad = build(None)(*args)

    return h_tilde_pad[:B, :Dq], attn_pad[:B, :S]


if __name__ == "__main__":
    key = jax.random.PRNGKey(0)
    B, S, Dq, Dc = 2, 8, 32, 48   # batch, seq_len, query_dim, ctx_dim
    k1, k2, k3, k4, k5 = jax.random.split(key, 5)

    h = jax.random.normal(k1, (B, Dq), dtype=jnp.float32)
    context = jax.random.normal(k2, (B, S, Dc), dtype=jnp.float32)
    mask = (jax.random.uniform(k3, (B, S)) < 0.25).astype(jnp.int32)
    mask = mask.at[:, 0].set(0)   # >= 1 unmasked position per row (torch parity)

    # Deterministic synthetic parameters (shapes per nn.Linear in __init__).
    w_in = (0.1 * jax.random.normal(k4, (Dc, Dq))).astype(jnp.float32)
    w_out = (0.1 * jax.random.normal(k5, (Dq, Dq + Dc))).astype(jnp.float32)

    h_tilde, attn = jax.block_until_ready(
        soft_dot_attention(h, context, mask, w_in, w_out))

    # Pure-JAX reference of the PyTorch forward.
    target_ref = h @ w_in.T
    logits_ref = jnp.einsum('bsd,bd->bs', context, target_ref)
    logits_ref = jnp.where(mask != 0, -jnp.inf, logits_ref)
    attn_ref = jax.nn.softmax(logits_ref, axis=-1)
    weighted_ref = jnp.einsum('bs,bsd->bd', attn_ref, context)
    h_tilde_ref = jnp.tanh(
        jnp.concatenate([weighted_ref, h], axis=-1) @ w_out.T)

    assert h_tilde.shape == (B, Dq) and attn.shape == (B, S)
    # Approx (EUP) reciprocal in the softmax => slightly relaxed tolerance;
    # real bugs produce errors orders of magnitude larger.
    assert jnp.allclose(attn, attn_ref, atol=5e-3, rtol=5e-3), \
        float(jnp.max(jnp.abs(attn - attn_ref)))
    assert jnp.allclose(h_tilde, h_tilde_ref, atol=5e-3, rtol=5e-3), \
        float(jnp.max(jnp.abs(h_tilde - h_tilde_ref)))

    # Fully-masked rows must stay finite (finite fill instead of -inf).
    full_mask = jnp.ones((B, S), dtype=jnp.int32)
    h_tilde_m, attn_m = jax.block_until_ready(
        soft_dot_attention(h, context, full_mask, w_in, w_out))
    assert bool(jnp.all(jnp.isfinite(attn_m)))
    assert bool(jnp.all(jnp.isfinite(h_tilde_m)))

    print("KERNEL_OK")
</pallas_src>

<mosaic_0001>
module attributes {stable_mosaic.version = 11 : i64} {
  func.func @_softdot_kernel(%arg0: i32, %arg1: memref<8x32xf32, #tpu.memory_space<vmem>>, %arg2: memref<8x8x48xf32, #tpu.memory_space<vmem>>, %arg3: memref<8x8xi32, #tpu.memory_space<vmem>>, %arg4: memref<32x48xf32, #tpu.memory_space<vmem>>, %arg5: memref<48x128xf32, #tpu.memory_space<vmem>>, %arg6: memref<32x128xf32, #tpu.memory_space<vmem>>, %arg7: memref<8x128xf32, #tpu.memory_space<vmem>>, %arg8: memref<8x128xf32, #tpu.memory_space<vmem>>) attributes {dimension_semantics = [#tpu.dimension_semantics<parallel>], iteration_bounds = array<i64: 1>, scalar_prefetch = 0 : i64, scratch_operands = 0 : i64, tpu.core_type = #tpu.core_type<tc>, window_params = [{transform_indices = @transform_0, window_bounds = array<i64: 8, 32>}, {transform_indices = @transform_1, window_bounds = array<i64: 8, 8, 48>}, {transform_indices = @transform_2, window_bounds = array<i64: 8, 8>}, {pipeline_mode = #tpu.pipeline_mode<synchronous>, transform_indices = @transform_3, window_bounds = array<i64: 32, 48>}, {pipeline_mode = #tpu.pipeline_mode<synchronous>, transform_indices = @transform_4, window_bounds = array<i64: 48, 128>}, {pipeline_mode = #tpu.pipeline_mode<synchronous>, transform_indices = @transform_5, window_bounds = array<i64: 32, 128>}, {transform_indices = @transform_6, window_bounds = array<i64: 8, 128>}, {transform_indices = @transform_7, window_bounds = array<i64: 8, 128>}]} {
    %c0 = arith.constant 0 : index
    %c0_0 = arith.constant 0 : index
    %0 = vector.load %arg1[%c0, %c0_0] : memref<8x32xf32, #tpu.memory_space<vmem>>, vector<8x32xf32>
    %c0_1 = arith.constant 0 : index
    %c0_2 = arith.constant 0 : index
    %c0_3 = arith.constant 0 : index
    %1 = vector.load %arg2[%c0_1, %c0_2, %c0_3] : memref<8x8x48xf32, #tpu.memory_space<vmem>>, vector<8x8x48xf32>
    %c0_4 = arith.constant 0 : index
    %c0_5 = arith.constant 0 : index
    %2 = vector.load %arg3[%c0_4, %c0_5] : memref<8x8xi32, #tpu.memory_space<vmem>>, vector<8x8xi32>
    %c0_i32 = arith.constant 0 : i32
    %3 = vector.broadcast %c0_i32 : i32 to vector<8x8xi32>
    %4 = arith.cmpi ne, %2, %3 : vector<8x8xi32>
    %c0_6 = arith.constant 0 : index
    %c0_7 = arith.constant 0 : index
    %5 = vector.load %arg4[%c0_6, %c0_7] : memref<32x48xf32, #tpu.memory_space<vmem>>, vector<32x48xf32>
    %cst = arith.constant dense<0.000000e+00> : vector<8x48xf32>
    %6 = tpu.matmul %0, %5, %cst {dimension_numbers = #tpu.dot_dimension_numbers<[1], [0], [0], [1], [0, 0, 1, 1], [], []>} : vector<8x32xf32>, vector<32x48xf32>, vector<8x48xf32> -> vector<8x48xf32>
    %7 = vector.shape_cast %6 : vector<8x48xf32> to vector<8x1x48xf32>
    %8 = vector.broadcast %7 : vector<8x1x48xf32> to vector<8x8x48xf32>
    %9 = arith.mulf %1, %8 : vector<8x8x48xf32>
    %cst_8 = arith.constant dense<0.000000e+00> : vector<8x8xf32>
    %10 = vector.multi_reduction <add>, %9, %cst_8 [2] : vector<8x8x48xf32> to vector<8x8xf32>
    %cst_9 = arith.constant -1.000000e+30 : f32
    %11 = vector.broadcast %cst_9 : f32 to vector<8x8xf32>
    %12 = arith.select %4, %11, %10 : vector<8x8xi1>, vector<8x8xf32>
    %cst_10 = arith.constant -1.000000e+30 : f32
    %13 = vector.broadcast %cst_10 : f32 to vector<8x120xf32>
    %14 = tpu.concatenate %12, %13 in 1 : vector<8x8xf32>, vector<8x120xf32> -> vector<8x128xf32>
    %cst_11 = arith.constant dense<0xFF800000> : vector<8xf32>
    %15 = vector.multi_reduction <maximumf>, %14, %cst_11 [1] : vector<8x128xf32> to vector<8xf32>
    %16 = vector.shape_cast %15 : vector<8xf32> to vector<8x1xf32>
    %17 = vector.broadcast %16 : vector<8x1xf32> to vector<8x128xf32>
    %18 = arith.subf %14, %17 : vector<8x128xf32>
    %19 = math.exp %18 : vector<8x128xf32>
    %cst_12 = arith.constant dense<0.000000e+00> : vector<8xf32>
    %20 = vector.multi_reduction <add>, %19, %cst_12 [1] : vector<8x128xf32> to vector<8xf32>
    %21 = vector.shape_cast %20 : vector<8xf32> to vector<8x1xf32>
    %22 = tpu.reciprocal %21 {approx = true} : vector<8x1xf32> -> vector<8x1xf32>
    %23 = vector.broadcast %22 : vector<8x1xf32> to vector<8x128xf32>
    %24 = arith.mulf %19, %23 : vector<8x128xf32>
    %25 = vector.extract_strided_slice %24 {offsets = [0, 0], sizes = [8, 8], strides = [1, 1]} : vector<8x128xf32> to vector<8x8xf32>
    %26 = vector.shape_cast %25 : vector<8x8xf32> to vector<8x8x1xf32>
    %27 = vector.broadcast %26 : vector<8x8x1xf32> to vector<8x8x48xf32>
    %28 = arith.mulf %1, %27 : vector<8x8x48xf32>
    %cst_13 = arith.constant dense<0.000000e+00> : vector<8x48xf32>
    %29 = vector.multi_reduction <add>, %28, %cst_13 [1] : vector<8x8x48xf32> to vector<8x48xf32>
    %c0_14 = arith.constant 0 : index
    %c0_15 = arith.constant 0 : index
    %30 = vector.load %arg5[%c0_14, %c0_15] : memref<48x128xf32, #tpu.memory_space<vmem>>, vector<48x128xf32>
    %cst_16 = arith.constant dense<0.000000e+00> : vector<8x128xf32>
    %31 = tpu.matmul %29, %30, %cst_16 {dimension_numbers = #tpu.dot_dimension_numbers<[1], [0], [0], [1], [0, 0, 1, 1], [], []>} : vector<8x48xf32>, vector<48x128xf32>, vector<8x128xf32> -> vector<8x128xf32>
    %c0_17 = arith.constant 0 : index
    %c0_18 = arith.constant 0 : index
    %32 = vector.load %arg6[%c0_17, %c0_18] : memref<32x128xf32, #tpu.memory_space<vmem>>, vector<32x128xf32>
    %cst_19 = arith.constant dense<0.000000e+00> : vector<8x128xf32>
    %33 = tpu.matmul %0, %32, %cst_19 {dimension_numbers = #tpu.dot_dimension_numbers<[1], [0], [0], [1], [0, 0, 1, 1], [], []>} : vector<8x32xf32>, vector<32x128xf32>, vector<8x128xf32> -> vector<8x128xf32>
    %34 = arith.addf %31, %33 : vector<8x128xf32>
    %35 = math.tanh %34 : vector<8x128xf32>
    %c0_20 = arith.constant 0 : index
    %c0_21 = arith.constant 0 : index
    %36 = vector.load %arg7[%c0_20, %c0_21] : memref<8x128xf32, #tpu.memory_space<vmem>>, vector<8x128xf32>
    tpu.vector_store %arg7[%c0_20, %c0_21], %35 {strides = array<i32>} : memref<8x128xf32, #tpu.memory_space<vmem>>, vector<8x128xf32>,
    %c0_22 = arith.constant 0 : index
    %c0_23 = arith.constant 0 : index
    %37 = vector.load %arg8[%c0_22, %c0_23] : memref<8x128xf32, #tpu.memory_space<vmem>>, vector<8x128xf32>
    tpu.vector_store %arg8[%c0_22, %c0_23], %24 {strides = array<i32>} : memref<8x128xf32, #tpu.memory_space<vmem>>, vector<8x128xf32>,
    return
  }
  func.func @transform_0(%arg0: i32) -> (i32, i32) {
    %c0_i32 = arith.constant 0 : i32
    %c0_i32_0 = arith.constant 0 : i32
    return %arg0, %c0_i32 : i32, i32
  }
  func.func @transform_1(%arg0: i32) -> (i32, i32, i32) {
    %c0_i32 = arith.constant 0 : i32
    %c0_i32_0 = arith.constant 0 : i32
    %c0_i32_1 = arith.constant 0 : i32
    return %arg0, %c0_i32, %c0_i32_0 : i32, i32, i32
  }
  func.func @transform_2(%arg0: i32) -> (i32, i32) {
    %c0_i32 = arith.constant 0 : i32
    %c0_i32_0 = arith.constant 0 : i32
    return %arg0, %c0_i32 : i32, i32
  }
  func.func @transform_3(%arg0: i32) -> (i32, i32) {
    %c0_i32 = arith.constant 0 : i32
    %c0_i32_0 = arith.constant 0 : i32
    %c0_i32_1 = arith.constant 0 : i32
    return %c0_i32, %c0_i32_0 : i32, i32
  }
  func.func @transform_4(%arg0: i32) -> (i32, i32) {
    %c0_i32 = arith.constant 0 : i32
    %c0_i32_0 = arith.constant 0 : i32
    %c0_i32_1 = arith.constant 0 : i32
    return %c0_i32, %c0_i32_0 : i32, i32
  }
  func.func @transform_5(%arg0: i32) -> (i32, i32) {
    %c0_i32 = arith.constant 0 : i32
    %c0_i32_0 = arith.constant 0 : i32
    %c0_i32_1 = arith.constant 0 : i32
    return %c0_i32, %c0_i32_0 : i32, i32
  }
  func.func @transform_6(%arg0: i32) -> (i32, i32) {
    %c0_i32 = arith.constant 0 : i32
    %c0_i32_0 = arith.constant 0 : i32
    return %arg0, %c0_i32 : i32, i32
  }
  func.func @transform_7(%arg0: i32) -> (i32, i32) {
    %c0_i32 = arith.constant 0 : i32
    %c0_i32_0 = arith.constant 0 : i32
    return %arg0, %c0_i32 : i32, i32
  }
}

module attributes {stable_mosaic.version = 11 : i64} {
  func.func @_softdot_kernel(%arg0: i32, %arg1: memref<8x32xf32, #tpu.memory_space<vmem>>, %arg2: memref<8x8x48xf32, #tpu.memory_space<vmem>>, %arg3: memref<8x8xi32, #tpu.memory_space<vmem>>, %arg4: memref<32x48xf32, #tpu.memory_space<vmem>>, %arg5: memref<48x128xf32, #tpu.memory_space<vmem>>, %arg6: memref<32x128xf32, #tpu.memory_space<vmem>>, %arg7: memref<8x128xf32, #tpu.memory_space<vmem>>, %arg8: memref<8x128xf32, #tpu.memory_space<vmem>>) attributes {dimension_semantics = [#tpu.dimension_semantics<parallel>], iteration_bounds = array<i64: 1>, scalar_prefetch = 0 : i64, scratch_operands = 0 : i64, tpu.core_type = #tpu.core_type<tc>, window_params = [{transform_indices = @transform_0, window_bounds = array<i64: 8, 32>}, {transform_indices = @transform_1, window_bounds = array<i64: 8, 8, 48>}, {transform_indices = @transform_2, window_bounds = array<i64: 8, 8>}, {pipeline_mode = #tpu.pipeline_mode<synchronous>, transform_indices = @transform_3, window_bounds = array<i64: 32, 48>}, {pipeline_mode = #tpu.pipeline_mode<synchronous>, transform_indices = @transform_4, window_bounds = array<i64: 48, 128>}, {pipeline_mode = #tpu.pipeline_mode<synchronous>, transform_indices = @transform_5, window_bounds = array<i64: 32, 128>}, {transform_indices = @transform_6, window_bounds = array<i64: 8, 128>}, {transform_indices = @transform_7, window_bounds = array<i64: 8, 128>}]} {
    %c0 = arith.constant 0 : index
    %c0_0 = arith.constant 0 : index
    %0 = vector.load %arg1[%c0, %c0_0] : memref<8x32xf32, #tpu.memory_space<vmem>>, vector<8x32xf32>
    %c0_1 = arith.constant 0 : index
    %c0_2 = arith.constant 0 : index
    %c0_3 = arith.constant 0 : index
    %1 = vector.load %arg2[%c0_1, %c0_2, %c0_3] : memref<8x8x48xf32, #tpu.memory_space<vmem>>, vector<8x8x48xf32>
    %c0_4 = arith.constant 0 : index
    %c0_5 = arith.constant 0 : index
    %2 = vector.load %arg3[%c0_4, %c0_5] : memref<8x8xi32, #tpu.memory_space<vmem>>, vector<8x8xi32>
    %c0_i32 = arith.constant 0 : i32
    %3 = vector.broadcast %c0_i32 : i32 to vector<8x8xi32>
    %4 = arith.cmpi ne, %2, %3 : vector<8x8xi32>
    %c0_6 = arith.constant 0 : index
    %c0_7 = arith.constant 0 : index
    %5 = vector.load %arg4[%c0_6, %c0_7] : memref<32x48xf32, #tpu.memory_space<vmem>>, vector<32x48xf32>
    %cst = arith.constant dense<0.000000e+00> : vector<8x48xf32>
    %6 = tpu.matmul %0, %5, %cst {dimension_numbers = #tpu.dot_dimension_numbers<[1], [0], [0], [1], [0, 0, 1, 1], [], []>} : vector<8x32xf32>, vector<32x48xf32>, vector<8x48xf32> -> vector<8x48xf32>
    %7 = vector.shape_cast %6 : vector<8x48xf32> to vector<8x1x48xf32>
    %8 = vector.broadcast %7 : vector<8x1x48xf32> to vector<8x8x48xf32>
    %9 = arith.mulf %1, %8 : vector<8x8x48xf32>
    %cst_8 = arith.constant dense<0.000000e+00> : vector<8x8xf32>
    %10 = vector.multi_reduction <add>, %9, %cst_8 [2] : vector<8x8x48xf32> to vector<8x8xf32>
    %cst_9 = arith.constant -1.000000e+30 : f32
    %11 = vector.broadcast %cst_9 : f32 to vector<8x8xf32>
    %12 = arith.select %4, %11, %10 : vector<8x8xi1>, vector<8x8xf32>
    %cst_10 = arith.constant -1.000000e+30 : f32
    %13 = vector.broadcast %cst_10 : f32 to vector<8x120xf32>
    %14 = tpu.concatenate %12, %13 in 1 : vector<8x8xf32>, vector<8x120xf32> -> vector<8x128xf32>
    %cst_11 = arith.constant dense<0xFF800000> : vector<8xf32>
    %15 = vector.multi_reduction <maximumf>, %14, %cst_11 [1] : vector<8x128xf32> to vector<8xf32>
    %16 = vector.shape_cast %15 : vector<8xf32> to vector<8x1xf32>
    %17 = vector.broadcast %16 : vector<8x1xf32> to vector<8x128xf32>
    %18 = arith.subf %14, %17 : vector<8x128xf32>
    %19 = math.exp %18 : vector<8x128xf32>
    %cst_12 = arith.constant dense<0.000000e+00> : vector<8xf32>
    %20 = vector.multi_reduction <add>, %19, %cst_12 [1] : vector<8x128xf32> to vector<8xf32>
    %21 = vector.shape_cast %20 : vector<8xf32> to vector<8x1xf32>
    %22 = tpu.reciprocal %21 {approx = true} : vector<8x1xf32> -> vector<8x1xf32>
    %23 = vector.broadcast %22 : vector<8x1xf32> to vector<8x128xf32>
    %24 = arith.mulf %19, %23 : vector<8x128xf32>
    %25 = vector.extract_strided_slice %24 {offsets = [0, 0], sizes = [8, 8], strides = [1, 1]} : vector<8x128xf32> to vector<8x8xf32>
    %26 = vector.shape_cast %25 : vector<8x8xf32> to vector<8x8x1xf32>
    %27 = vector.broadcast %26 : vector<8x8x1xf32> to vector<8x8x48xf32>
    %28 = arith.mulf %1, %27 : vector<8x8x48xf32>
    %cst_13 = arith.constant dense<0.000000e+00> : vector<8x48xf32>
    %29 = vector.multi_reduction <add>, %28, %cst_13 [1] : vector<8x8x48xf32> to vector<8x48xf32>
    %c0_14 = arith.constant 0 : index
    %c0_15 = arith.constant 0 : index
    %30 = vector.load %arg5[%c0_14, %c0_15] : memref<48x128xf32, #tpu.memory_space<vmem>>, vector<48x128xf32>
    %cst_16 = arith.constant dense<0.000000e+00> : vector<8x128xf32>
    %31 = tpu.matmul %29, %30, %cst_16 {dimension_numbers = #tpu.dot_dimension_numbers<[1], [0], [0], [1], [0, 0, 1, 1], [], []>} : vector<8x48xf32>, vector<48x128xf32>, vector<8x128xf32> -> vector<8x128xf32>
    %c0_17 = arith.constant 0 : index
    %c0_18 = arith.constant 0 : index
    %32 = vector.load %arg6[%c0_17, %c0_18] : memref<32x128xf32, #tpu.memory_space<vmem>>, vector<32x128xf32>
    %cst_19 = arith.constant dense<0.000000e+00> : vector<8x128xf32>
    %33 = tpu.matmul %0, %32, %cst_19 {dimension_numbers = #tpu.dot_dimension_numbers<[1], [0], [0], [1], [0, 0, 1, 1], [], []>} : vector<8x32xf32>, vector<32x128xf32>, vector<8x128xf32> -> vector<8x128xf32>
    %34 = arith.addf %31, %33 : vector<8x128xf32>
    %35 = math.tanh %34 : vector<8x128xf32>
    %c0_20 = arith.constant 0 : index
    %c0_21 = arith.constant 0 : index
    %36 = vector.load %arg7[%c0_20, %c0_21] : memref<8x128xf32, #tpu.memory_space<vmem>>, vector<8x128xf32>
    tpu.vector_store %arg7[%c0_20, %c0_21], %35 {strides = array<i32>} : memref<8x128xf32, #tpu.memory_space<vmem>>, vector<8x128xf32>,
    %c0_22 = arith.constant 0 : index
    %c0_23 = arith.constant 0 : index
    %37 = vector.load %arg8[%c0_22, %c0_23] : memref<8x128xf32, #tpu.memory_space<vmem>>, vector<8x128xf32>
    tpu.vector_store %arg8[%c0_22, %c0_23], %24 {strides = array<i32>} : memref<8x128xf32, #tpu.memory_space<vmem>>, vector<8x128xf32>,
    return
  }
  func.func @transform_0(%arg0: i32) -> (i32, i32) {
    %c0_i32 = arith.constant 0 : i32
    %c0_i32_0 = arith.constant 0 : i32
    return %arg0, %c0_i32 : i32, i32
  }
  func.func @transform_1(%arg0: i32) -> (i32, i32, i32) {
    %c0_i32 = arith.constant 0 : i32
    %c0_i32_0 = arith.constant 0 : i32
    %c0_i32_1 = arith.constant 0 : i32
    return %arg0, %c0_i32, %c0_i32_0 : i32, i32, i32
  }
  func.func @transform_2(%arg0: i32) -> (i32, i32) {
    %c0_i32 = arith.constant 0 : i32
    %c0_i32_0 = arith.constant 0 : i32
    return %arg0, %c0_i32 : i32, i32
  }
  func.func @transform_3(%arg0: i32) -> (i32, i32) {
    %c0_i32 = arith.constant 0 : i32
    %c0_i32_0 = arith.constant 0 : i32
    %c0_i32_1 = arith.constant 0 : i32
    return %c0_i32, %c0_i32_0 : i32, i32
  }
  func.func @transform_4(%arg0: i32) -> (i32, i32) {
    %c0_i32 = arith.constant 0 : i32
    %c0_i32_0 = arith.constant 0 : i32
    %c0_i32_1 = arith.constant 0 : i32
    return %c0_i32, %c0_i32_0 : i32, i32
  }
  func.func @transform_5(%arg0: i32) -> (i32, i32) {
    %c0_i32 = arith.constant 0 : i32
    %c0_i32_0 = arith.constant 0 : i32
    %c0_i32_1 = arith.constant 0 : i32
    return %c0_i32, %c0_i32_0 : i32, i32
  }
  func.func @transform_6(%arg0: i32) -> (i32, i32) {
    %c0_i32 = arith.constant 0 : i32
    %c0_i32_0 = arith.constant 0 : i32
    return %arg0, %c0_i32 : i32, i32
  }
  func.func @transform_7(%arg0: i32) -> (i32, i32) {
    %c0_i32 = arith.constant 0 : i32
    %c0_i32_0 = arith.constant 0 : i32
    return %arg0, %c0_i32 : i32, i32
  }
}

</mosaic_0001>

<llo_original>
// kernel: tpu_custom_call.1
$region0: #{tpu_custom_call.1}
  #allocation0 [shape = 'u32[]', space=smem, size = 0x4, offset = 0x4, fixed_abs, tag = 'smem constant byte address 0x4 - core index']
  #allocation1 [shape = 'u32[144,128]{1,0:T(1,128)}', space=vmem, size = 0x12000, scoped, tag = 'internal scratch']
  %s0 = inlined_call_operand.hbm [shape: f32[8,32], index: 0, kind: input, shape index: {}]
  %s1 = inlined_call_operand.hbm [shape: f32[8,8,48], index: 1, kind: input, shape index: {}]
  %s2 = inlined_call_operand.hbm [shape: s32[8,8], index: 2, kind: input, shape index: {}]
  %s3 = inlined_call_operand.hbm [shape: f32[32,48], index: 3, kind: input, shape index: {}]
  %s4 = inlined_call_operand.hbm [shape: f32[48,128], index: 4, kind: input, shape index: {}]
  %s5 = inlined_call_operand.hbm [shape: f32[32,128], index: 5, kind: input, shape index: {}]
  %s6 = inlined_call_operand.hbm [shape: f32[8,128], index: 6, kind: output, shape index: {0}]
  %s7 = inlined_call_operand.hbm [shape: f32[8,128], index: 7, kind: output, shape index: {1}]
  %8 = xla_tuple %s6, %s7
  %s9 = sld [smem:[#allocation0]]
  $region66: #{tpu_custom_call.1} parent=0
    _
  %s11 = ssub.s32 1, %s9
  %s12 = scalar_select 0, %s11, %s9
  $region1: #{tpu_custom_call.1} parent=0
    #allocation2 [shape = 'u8[4096]{0}', space=vmem, size = 0x1000, scoped, tag = 'input window, operand 0, single buffered']
    #allocation3 [shape = 's32[1]{0}', space=sflag, size = 0x4, scoped, tag = 'scoped memory for tpu_custom_call.1']
    #allocation4 [shape = 's32[1]{0}', space=sflag, size = 0x4, scoped, tag = 'scoped memory for tpu_custom_call.1']
    #allocation5 [shape = 'u8[32768]{0}', space=vmem, size = 0x8000, scoped, tag = 'input window, operand 1, single buffered']
    #allocation6 [shape = 's32[1]{0}', space=sflag, size = 0x4, scoped, tag = 'scoped memory for tpu_custom_call.1']
    #allocation7 [shape = 'u8[4096]{0}', space=vmem, size = 0x1000, scoped, tag = 'input window, operand 2, single buffered']
    #allocation8 [shape = 'u8[16384]{0}', space=vmem, size = 0x4000, scoped, tag = 'input window, operand 3, single buffered']
    #allocation9 [shape = 's32[1]{0}', space=sflag, size = 0x4, scoped, tag = 'scoped memory for tpu_custom_call.1']
    #allocation10 [shape = 'u8[24576]{0}', space=vmem, size = 0x6000, scoped, tag = 'input window, operand 4, single buffered']
    #allocation11 [shape = 'u8[16384]{0}', space=vmem, size = 0x4000, scoped, tag = 'input window, operand 5, single buffered']
    #allocation12 [shape = 's32[1]{0}', space=sflag, size = 0x4, scoped, tag = 'scoped memory for tpu_custom_call.1']
    #allocation13 [shape = 'u8[4096]{0}', space=vmem, size = 0x1000, scoped, tag = 'output window, operand 0, single buffered']
    #allocation14 [shape = 'u8[4096]{0}', space=vmem, size = 0x1000, scoped, tag = 'output window, operand 1, single buffered']
    #allocation15 [shape = 's32[1]{0}', space=sflag, size = 0x4, scoped, tag = 'scoped memory for tpu_custom_call.1']
    %13 = vsyncpa [#allocation3], 0
    %14 = vsyncpa [#allocation6], 0
    %15 = vsyncpa [#allocation9], 0
    %16 = vsyncpa [#allocation12], 0
    %17 = vsyncpa [#allocation4], 0
    %18 = vsyncpa [#allocation15], 0
    // Predicated region
    $region2: #{tpu_custom_call.1} parent=1 // pred_check
      _
    $region3: #{tpu_custom_call.1} parent=1 // pred_check_branch
      %20 = sbr.rel (0) target = $region5
    $region4: #{tpu_custom_call.1} parent=1 // pred_region
      %s22 = ssub.s32 128, 128
      %23 = vsyncadd [#allocation3], %s22
      %s25 = sshll.u32 [#allocation2], 4
      %s26 = int_to_ptr.vmem [resolvable:$true] %s25
      %28 = dma.hbm_to_vmem [thread:$0]  %s0, 128, %s26, [#allocation3]
    $region5: #{tpu_custom_call.1} parent=1 // pred_fallthru
      _
    // Predicated region
    $region6: #{tpu_custom_call.1} parent=1 // pred_check
      _
    $region7: #{tpu_custom_call.1} parent=1 // pred_check_branch
      %30 = sbr.rel (0) target = $region9
    $region8: #{tpu_custom_call.1} parent=1 // pred_region
      %s32 = ssub.s32 1024, 1024
      %33 = vsyncadd [#allocation6], %s32
      %s34 = sshll.u32 [#allocation5], 4
      %s35 = int_to_ptr.vmem [resolvable:$true] %s34
      %40 = dma.hbm_to_vmem [thread:$0]  %s1, 1024, %s35, [#allocation6], 128, 128, 8
    $region9: #{tpu_custom_call.1} parent=1 // pred_fallthru
      _
    // Predicated region
    $region10: #{tpu_custom_call.1} parent=1 // pred_check
      _
    $region11: #{tpu_custom_call.1} parent=1 // pred_check_branch
      %42 = sbr.rel (0) target = $region13
    $region12: #{tpu_custom_call.1} parent=1 // pred_region
      %s44 = ssub.s32 128, 128
      %45 = vsyncadd [#allocation6], %s44
      %s47 = sshll.u32 [#allocation7], 4
      %s48 = int_to_ptr.vmem [resolvable:$true] %s47
      %50 = dma.hbm_to_vmem [thread:$0]  %s2, 128, %s48, [#allocation6]
    $region13: #{tpu_custom_call.1} parent=1 // pred_fallthru
      _
    // Predicated region
    $region14: #{tpu_custom_call.1} parent=1 // pred_check
      _
    $region15: #{tpu_custom_call.1} parent=1 // pred_check_branch
      %52 = sbr.rel (0) target = $region17
    $region16: #{tpu_custom_call.1} parent=1 // pred_region
      %s54 = ssub.s32 512, 512
      %55 = vsyncadd [#allocation9], %s54
      %s56 = sshll.u32 [#allocation8], 4
      %s57 = int_to_ptr.vmem [resolvable:$true] %s56
      %62 = dma.hbm_to_vmem [thread:$0]  %s3, 512, %s57, [#allocation9], 128, 128, 8
    $region17: #{tpu_custom_call.1} parent=1 // pred_fallthru
      _
    // Predicated region
    $region18: #{tpu_custom_call.1} parent=1 // pred_check
      _
    $region19: #{tpu_custom_call.1} parent=1 // pred_check_branch
      %64 = sbr.rel (0) target = $region21
    $region20: #{tpu_custom_call.1} parent=1 // pred_region
      %s66 = ssub.s32 768, 768
      %67 = vsyncadd [#allocation9], %s66
      %s68 = sshll.u32 [#allocation10], 4
      %s69 = int_to_ptr.vmem [resolvable:$true] %s68
      %74 = dma.hbm_to_vmem [thread:$0]  %s4, 768, %s69, [#allocation9], 128, 128, 8
    $region21: #{tpu_custom_call.1} parent=1 // pred_fallthru
      _
    // Predicated region
    $region22: #{tpu_custom_call.1} parent=1 // pred_check
      _
    $region23: #{tpu_custom_call.1} parent=1 // pred_check_branch
      %76 = sbr.rel (0) target = $region25
    $region24: #{tpu_custom_call.1} parent=1 // pred_region
      %s78 = ssub.s32 512, 512
      %79 = vsyncadd [#allocation12], %s78
      %s80 = sshll.u32 [#allocation11], 4
      %s81 = int_to_ptr.vmem [resolvable:$true] %s80
      %86 = dma.hbm_to_vmem [thread:$0]  %s5, 512, %s81, [#allocation12], 128, 128, 8
    $region25: #{tpu_custom_call.1} parent=1 // pred_fallthru
      _
    // Predicated region
    $region26: #{tpu_custom_call.1} parent=1 // pred_check
      _
    $region27: #{tpu_custom_call.1} parent=1 // pred_check_branch
      %88 = sbr.rel (0) target = $region29
    $region28: #{tpu_custom_call.1} parent=1 // pred_region
      %89 = dma.done [#allocation3], 128
    $region29: #{tpu_custom_call.1} parent=1 // pred_fallthru
      _
    // Predicated region
    $region30: #{tpu_custom_call.1} parent=1 // pred_check
      _
    $region31: #{tpu_custom_call.1} parent=1 // pred_check_branch
      %91 = sbr.rel (0) target = $region33
    $region32: #{tpu_custom_call.1} parent=1 // pred_region
      %92 = dma.done [#allocation6], 1024
    $region33: #{tpu_custom_call.1} parent=1 // pred_fallthru
      _
    // Predicated region
    $region34: #{tpu_custom_call.1} parent=1 // pred_check
      _
    $region35: #{tpu_custom_call.1} parent=1 // pred_check_branch
      %94 = sbr.rel (0) target = $region37
    $region36: #{tpu_custom_call.1} parent=1 // pred_region
      %95 = dma.done [#allocation6], 128
    $region37: #{tpu_custom_call.1} parent=1 // pred_fallthru
      _
    // Predicated region
    $region38: #{tpu_custom_call.1} parent=1 // pred_check
      _
    $region39: #{tpu_custom_call.1} parent=1 // pred_check_branch
      %97 = sbr.rel (0) target = $region41
    $region40: #{tpu_custom_call.1} parent=1 // pred_region
      %98 = dma.done [#allocation9], 512
    $region41: #{tpu_custom_call.1} parent=1 // pred_fallthru
      _
    // Predicated region
    $region42: #{tpu_custom_call.1} parent=1 // pred_check
      _
    $region43: #{tpu_custom_call.1} parent=1 // pred_check_branch
      %100 = sbr.rel (0) target = $region45
    $region44: #{tpu_custom_call.1} parent=1 // pred_region
      %101 = dma.done [#allocation9], 768
    $region45: #{tpu_custom_call.1} parent=1 // pred_fallthru
      _
    // Predicated region
    $region46: #{tpu_custom_call.1} parent=1 // pred_check
      _
    $region47: #{tpu_custom_call.1} parent=1 // pred_check_branch
      %103 = sbr.rel (0) target = $region49
    $region48: #{tpu_custom_call.1} parent=1 // pred_region
      %104 = dma.done [#allocation12], 512
    $region49: #{tpu_custom_call.1} parent=1 // pred_fallthru
      _
    %v105 = vld [vmem:[#allocation2] sm:$0xff]
    %v106 = vld [vmem:[#allocation5] sm:$0xff]
    %v107 = vld [vmem:[#allocation5 + $0x8] sm:$0xff]
    %v108 = vld [vmem:[#allocation5 + $0x10] sm:$0xff]
    %v109 = vld [vmem:[#allocation5 + $0x18] sm:$0xff]
    %v110 = vld [vmem:[#allocation5 + $0x20] sm:$0xff]
    %v111 = vld [vmem:[#allocation5 + $0x28] sm:$0xff]
    %v112 = vld [vmem:[#allocation5 + $0x30] sm:$0xff]
    %v113 = vld [vmem:[#allocation5 + $0x38] sm:$0xff]
    %v114 = vld [vmem:[#allocation7] sm:$0xff]
    %vm115 = vcmp.ne.s32.totalorder %v114, 0
    %v116 = vld [vmem:[#allocation8] sm:$0xff]
    %v117 = vld [vmem:[#allocation8 + $0x8] sm:$0xff]
    %v118 = vld [vmem:[#allocation8 + $0x10] sm:$0xff]
    %v119 = vld [vmem:[#allocation8 + $0x18] sm:$0xff]
    %vm120 = vcmask 261120
    %v122 = vsel %vm120, %v105, 0
    %124 = vmatprep.subr.mxu0 0.0
    %125 = vmatpush1.msra.mxu0 %v116
    %126 = vmatprep.subr.mxu0 0.0
    %127 = vmatpush1.msra.mxu0 %v117
    %128 = vmatprep.subr.mxu0 0.0
    %129 = vmatpush1.msra.mxu0 %v118
    %130 = vmatprep.subr.mxu0 0.0
    %131 = vmatpush1.msra.mxu0 %v119
    %132 = vmatprep.subr.mxu0 0.0
    %133 = vmatpush1.msra.mxu0 0.0
    %134 = vmatprep.subr.mxu0 0.0
    %135 = vmatpush1.msra.mxu0 0.0
    %136 = vmatprep.subr.mxu0 0.0
    %137 = vmatpush1.msra.mxu0 0.0
    %138 = vmatprep.subr.mxu0 0.0
    %139 = vmatpush1.msra.mxu0 0.0
    %140 = vmatprep.subr.mxu0 0.0
    %141 = vmatpush1.msra.mxu0 0.0
    %142 = vmatprep.subr.mxu0 0.0
    %143 = vmatpush1.msra.mxu0 0.0
    %144 = vmatprep.subr.mxu0 0.0
    %145 = vmatpush1.msra.mxu0 0.0
    %146 = vmatprep.subr.mxu0 0.0
    %147 = vmatpush1.msra.mxu0 0.0
    %148 = vmatprep.subr.mxu0 0.0
    %149 = vmatpush1.msra.mxu0 0.0
    %150 = vmatprep.subr.mxu0 0.0
    %151 = vmatpush1.msra.mxu0 0.0
    %152 = vmatprep.subr.mxu0 0.0
    %153 = vmatpush1.msra.mxu0 0.0
    %154 = vmatprep.subr.mxu0 0.0
    %155 = vmatpush1.msra.mxu0 0.0
    %156 = vmatprep.subr.mxu0 0.0
    %157 = vmatpush1.msra.mxu0 0.0
    %158 = vmatprep.subr.mxu0 0.0
    %159 = vmatpush1.msra.mxu0 0.0
    %160 = vmatprep.subr.mxu0 0.0
    %161 = vmatpush1.msra.mxu0 0.0
    %162 = vmatprep.subr.mxu0 0.0
    %163 = vmatpush1.msra.mxu0 0.0
    %164 = vmatprep.subr.mxu0 0.0
    %165 = vmatpush1.msra.mxu0 0.0
    %166 = vmatprep.subr.mxu0 0.0
    %167 = vmatpush1.msra.mxu0 0.0
    %168 = vmatprep.subr.mxu0 0.0
    %169 = vmatpush1.msra.mxu0 0.0
    %170 = vmatprep.subr.mxu0 0.0
    %171 = vmatpush1.msra.mxu0 0.0
    %172 = vmatprep.subr.mxu0 0.0
    %173 = vmatpush1.msra.mxu0 0.0
    %174 = vmatprep.subr.mxu0 0.0
    %175 = vmatpush1.msra.mxu0 0.0
    %176 = vmatprep.subr.mxu0 0.0
    %177 = vmatpush1.msra.mxu0 0.0
    %178 = vmatprep.subr.mxu0 0.0
    %179 = vmatpush1.msra.mxu0 0.0
    %180 = vmatprep.subr.mxu0 0.0
    %181 = vmatpush1.msra.mxu0 0.0
    %182 = vmatprep.subr.mxu0 0.0
    %183 = vmatpush1.msra.mxu0 0.0
    %184 = vmatprep.subr.mxu0 0.0
    %185 = vmatpush1.msra.mxu0 0.0
    %186 = vmatprep.subr.mxu0 0.0
    %187 = vmatpush1.msra.mxu0 0.0
    %188 = vmatprep.mubr.f32.mxu0 0.0
    %189 = vmatmul.mubr.f32.gmra.mrb[0].mxu0 %v122
    %v190 = vpop.f32.mrb[0].mxu0
    %v191 = vadd.f32 0.0, %v190
    %v192 = vpop.f32.mrb[0].mxu0
    %193 = vdwg.mxu0
    %v195 = vcombine.high %v191, %v191
    %v197 = vunpack.c.l.s4 1966171168
    %v198 = vunpack.c.0.s8 %v197
    %v199 = vlaneseq
    %v200 = vshrl.u32 %v199, 7
    %v201 = vsub.s32 %v198, %v200
    %v202 = vrot.slane %v191, %v201
    %v204 = vunpack.c.l.s4 1966171168
    %v205 = vunpack.c.0.s8 %v204
    %v206 = vlaneseq
    %v207 = vshrl.u32 %v206, 7
    %v208 = vsub.s32 %v205, %v207
    %v209 = vrot.slane %v195, %v208
    %v210 = vcombine.high %v202, %v202
    %v211 = vcombine.high %v209, %v209
    %v213 = vunpack.c.l.s4 1966171168
    %v214 = vunpack.c.0.s8 %v213
    %v215 = vlaneseq
    %v216 = vshrl.u32 %v215, 7
    %v217 = vsub.s32 %v214, %v216
    %v218 = vrot.slane %v202, %v217
    %v220 = vunpack.c.l.s4 1966171168
    %v221 = vunpack.c.0.s8 %v220
    %v222 = vlaneseq
    %v223 = vshrl.u32 %v222, 7
    %v224 = vsub.s32 %v221, %v223
    %v225 = vrot.slane %v209, %v224
    %v227 = vunpack.c.l.s4 1966171168
    %v228 = vunpack.c.0.s8 %v227
    %v229 = vlaneseq
    %v230 = vshrl.u32 %v229, 7
    %v231 = vsub.s32 %v228, %v230
    %v232 = vrot.slane %v210, %v231
    %v234 = vunpack.c.l.s4 1966171168
    %v235 = vunpack.c.0.s8 %v234
    %v236 = vlaneseq
    %v237 = vshrl.u32 %v236, 7
    %v238 = vsub.s32 %v235, %v237
    %v239 = vrot.slane %v211, %v238
    %v240 = vcombine.high %v218, %v218
    %v241 = vcombine.high %v225, %v225
    %v242 = vcombine.high %v232, %v232
    %v243 = vcombine.high %v239, %v239
    %v244 = vlaneseq
    %v245 = vshrl.u32 %v244, 7
    %v246 = vsub.s32 0, %v245
    %v247 = vrot.slane %v218, %v246
    %v248 = vlaneseq
    %v249 = vshrl.u32 %v248, 7
    %v250 = vsub.s32 0, %v249
    %v251 = vrot.slane %v232, %v250
    %v252 = vlaneseq
    %v253 = vshrl.u32 %v252, 7
    %v254 = vsub.s32 0, %v253
    %v255 = vrot.slane %v240, %v254
    %v256 = vlaneseq
    %v257 = vshrl.u32 %v256, 7
    %v258 = vsub.s32 0, %v257
    %v259 = vrot.slane %v242, %v258
    %v260 = vlaneseq
    %v261 = vshrl.u32 %v260, 7
    %v262 = vsub.s32 0, %v261
    %v263 = vrot.slane %v225, %v262
    %v264 = vlaneseq
    %v265 = vshrl.u32 %v264, 7
    %v266 = vsub.s32 0, %v265
    %v267 = vrot.slane %v239, %v266
    %v268 = vlaneseq
    %v269 = vshrl.u32 %v268, 7
    %v270 = vsub.s32 0, %v269
    %v271 = vrot.slane %v241, %v270
    %v272 = vlaneseq
    %v273 = vshrl.u32 %v272, 7
    %v274 = vsub.s32 0, %v273
    %v275 = vrot.slane %v243, %v274
    %v284 = vmul.f32 %v106, %v247
    %v285 = vmul.f32 %v107, %v251
    %v286 = vmul.f32 %v108, %v255
    %v287 = vmul.f32 %v109, %v259
    %v288 = vmul.f32 %v110, %v263
    %v289 = vmul.f32 %v111, %v267
    %v290 = vmul.f32 %v112, %v271
    %v291 = vmul.f32 %v113, %v275
    %vm292 = vcmask 392192
    %v293 = vsel %vm292, %v284, 0.0
    %294 = vadd.xlane.f32.xlu0 %v293
    %v295 = vpop.xlane.xlu0 %294
    %v296 = vsel %vm292, %v285, 0.0
    %297 = vadd.xlane.f32.xlu0 %v296
    %v298 = vpop.xlane.xlu0 %297
    %v299 = vsel %vm292, %v286, 0.0
    %300 = vadd.xlane.f32.xlu0 %v299
    %v301 = vpop.xlane.xlu0 %300
    %v302 = vsel %vm292, %v287, 0.0
    %303 = vadd.xlane.f32.xlu0 %v302
    %v304 = vpop.xlane.xlu0 %303
    %v305 = vsel %vm292, %v288, 0.0
    %306 = vadd.xlane.f32.xlu0 %v305
    %v307 = vpop.xlane.xlu0 %306
    %v308 = vsel %vm292, %v289, 0.0
    %309 = vadd.xlane.f32.xlu0 %v308
    %v310 = vpop.xlane.xlu0 %309
    %v311 = vsel %vm292, %v290, 0.0
    %312 = vadd.xlane.f32.xlu0 %v311
    %v313 = vpop.xlane.xlu0 %312
    %v314 = vsel %vm292, %v291, 0.0
    %315 = vadd.xlane.f32.xlu0 %v314
    %v316 = vpop.xlane.xlu0 %315
    %v325 = vlaneseq
    %v326 = vand.u32 %v325, 127
    %v327 = vlaneseq
    %v328 = vshrl.u32 %v327, 7
    %v329 = vsub.s32 %v326, %v328
    %v330 = vrot.slane %v295, %v329
    %v331 = vlaneseq
    %v332 = vshrl.u32 %v331, 7
    %v333 = vsub.s32 %v326, %v332
    %v334 = vrot.slane %v298, %v333
    %v335 = vlaneseq
    %v336 = vshrl.u32 %v335, 7
    %v337 = vsub.s32 %v326, %v336
    %v338 = vrot.slane %v301, %v337
    %v339 = vlaneseq
    %v340 = vshrl.u32 %v339, 7
    %v341 = vsub.s32 %v326, %v340
    %v342 = vrot.slane %v304, %v341
    %v343 = vlaneseq
    %v344 = vshrl.u32 %v343, 7
    %v345 = vsub.s32 %v326, %v344
    %v346 = vrot.slane %v307, %v345
    %v347 = vlaneseq
    %v348 = vshrl.u32 %v347, 7
    %v349 = vsub.s32 %v326, %v348
    %v350 = vrot.slane %v310, %v349
    %v351 = vlaneseq
    %v352 = vshrl.u32 %v351, 7
    %v353 = vsub.s32 %v326, %v352
    %v354 = vrot.slane %v313, %v353
    %v355 = vlaneseq
    %v356 = vshrl.u32 %v355, 7
    %v357 = vsub.s32 %v326, %v356
    %v358 = vrot.slane %v316, %v357
    %vm359 = vcmask 1041409
    %v360 = vsel %vm359, %v334, %v330
    %vm361 = vcmask 1042434
    %v362 = vsel %vm361, %v338, %v360
    %vm363 = vcmask 1043459
    %v364 = vsel %vm363, %v342, %v362
    %vm365 = vcmask 1044484
    %v366 = vsel %vm365, %v346, %v364
    %vm367 = vcmask 1045509
    %v368 = vsel %vm367, %v350, %v366
    %vm369 = vcmask 1046534
    %v370 = vsel %vm369, %v354, %v368
    %vm371 = vcmask 1047559
    %v372 = vsel %vm371, %v358, %v370
    %v374 = vsel %vm115, -1e+30, %v372
    %vm375 = vcmask 64512
    %v376 = vsel %vm375, %v374, -1e+30
    %377 = vmax.xlane.f32.xlu0 %v376
    %v378 = vpop.xlane.xlu0 %377
    %v379 = vsub.f32 %v376, %v378
    %v380 = vmul.f32 %v379, 1.442695
    %v381 = vpow.pop %v380
    %382 = vadd.xlane.f32.xlu0 %v381
    %v383 = vpop.xlane.xlu0 %382
    %v384 = vrcp.pop %v383
    %v385 = vmul.f32 %v381, %v384
    %v386 = vlaneseq
    %v387 = vshrl.u32 %v386, 7
    %v388 = vsub.s32 0, %v387
    %v389 = vrot.slane %v385, %v388
    %391 = vbcast.lane.b32.xlu0 %v389, 256
    %v392 = vpop.permute.xlu0 %391
    %v393 = vlaneseq
    %v394 = vshrl.u32 %v393, 7
    %v395 = vsub.s32 1, %v394
    %v396 = vrot.slane %v385, %v395
    %398 = vbcast.lane.b32.xlu0 %v396, 256
    %v399 = vpop.permute.xlu0 %398
    %v400 = vlaneseq
    %v401 = vshrl.u32 %v400, 7
    %v402 = vsub.s32 2, %v401
    %v403 = vrot.slane %v385, %v402
    %405 = vbcast.lane.b32.xlu0 %v403, 256
    %v406 = vpop.permute.xlu0 %405
    %v407 = vlaneseq
    %v408 = vshrl.u32 %v407, 7
    %v409 = vsub.s32 3, %v408
    %v410 = vrot.slane %v385, %v409
    %412 = vbcast.lane.b32.xlu0 %v410, 256
    %v413 = vpop.permute.xlu0 %412
    %v414 = vlaneseq
    %v415 = vshrl.u32 %v414, 7
    %v416 = vsub.s32 4, %v415
    %v417 = vrot.slane %v385, %v416
    %419 = vbcast.lane.b32.xlu0 %v417, 256
    %v420 = vpop.permute.xlu0 %419
    %v421 = vlaneseq
    %v422 = vshrl.u32 %v421, 7
    %v423 = vsub.s32 5, %v422
    %v424 = vrot.slane %v385, %v423
    %426 = vbcast.lane.b32.xlu0 %v424, 256
    %v427 = vpop.permute.xlu0 %426
    %v428 = vlaneseq
    %v429 = vshrl.u32 %v428, 7
    %v430 = vsub.s32 6, %v429
    %v431 = vrot.slane %v385, %v430
    %433 = vbcast.lane.b32.xlu0 %v431, 256
    %v434 = vpop.permute.xlu0 %433
    %v435 = vlaneseq
    %v436 = vshrl.u32 %v435, 7
    %v437 = vsub.s32 7, %v436
    %v438 = vrot.slane %v385, %v437
    %440 = vbcast.lane.b32.xlu0 %v438, 256
    %v441 = vpop.permute.xlu0 %440
    %v442 = vmul.f32 %v106, %v392
    %v443 = vmul.f32 %v107, %v399
    %v444 = vmul.f32 %v108, %v406
    %v445 = vmul.f32 %v109, %v413
    %v446 = vmul.f32 %v110, %v420
    %v447 = vmul.f32 %v111, %v427
    %v448 = vmul.f32 %v112, %v434
    %v449 = vmul.f32 %v113, %v441
    %v450 = vsel %vm292, %v442, 0.0
    %v451 = vrot.slane %v450, 4
    %v452 = vadd.f32 %v450, %v451
    %v453 = vrot.slane %v452, 2
    %v454 = vadd.f32 %v452, %v453
    %v455 = vrot.slane %v454, 1
    %v456 = vadd.f32 %v454, %v455
    %v457 = vsel %vm292, %v443, 0.0
    %v458 = vrot.slane %v457, 4
    %v459 = vadd.f32 %v457, %v458
    %v460 = vrot.slane %v459, 2
    %v461 = vadd.f32 %v459, %v460
    %v462 = vrot.slane %v461, 1
    %v463 = vadd.f32 %v461, %v462
    %v464 = vsel %vm292, %v444, 0.0
    %v465 = vrot.slane %v464, 4
    %v466 = vadd.f32 %v464, %v465
    %v467 = vrot.slane %v466, 2
    %v468 = vadd.f32 %v466, %v467
    %v469 = vrot.slane %v468, 1
    %v470 = vadd.f32 %v468, %v469
    %v471 = vsel %vm292, %v445, 0.0
    %v472 = vrot.slane %v471, 4
    %v473 = vadd.f32 %v471, %v472
    %v474 = vrot.slane %v473, 2
    %v475 = vadd.f32 %v473, %v474
    %v476 = vrot.slane %v475, 1
    %v477 = vadd.f32 %v475, %v476
    %v478 = vsel %vm292, %v446, 0.0
    %v479 = vrot.slane %v478, 4
    %v480 = vadd.f32 %v478, %v479
    %v481 = vrot.slane %v480, 2
    %v482 = vadd.f32 %v480, %v481
    %v483 = vrot.slane %v482, 1
    %v484 = vadd.f32 %v482, %v483
    %v485 = vsel %vm292, %v447, 0.0
    %v486 = vrot.slane %v485, 4
    %v487 = vadd.f32 %v485, %v486
    %v488 = vrot.slane %v487, 2
    %v489 = vadd.f32 %v487, %v488
    %v490 = vrot.slane %v489, 1
    %v491 = vadd.f32 %v489, %v490
    %v492 = vsel %vm292, %v448, 0.0
    %v493 = vrot.slane %v492, 4
    %v494 = vadd.f32 %v492, %v493
    %v495 = vrot.slane %v494, 2
    %v496 = vadd.f32 %v494, %v495
    %v497 = vrot.slane %v496, 1
    %v498 = vadd.f32 %v496, %v497
    %v499 = vsel %vm292, %v449, 0.0
    %v500 = vrot.slane %v499, 4
    %v501 = vadd.f32 %v499, %v500
    %v502 = vrot.slane %v501, 2
    %v503 = vadd.f32 %v501, %v502
    %v504 = vrot.slane %v503, 1
    %v505 = vadd.f32 %v503, %v504
    %v506 = vld [vmem:[#allocation10] sm:$0xff]
    %v507 = vld [vmem:[#allocation10 + $0x8] sm:$0xff]
    %v508 = vld [vmem:[#allocation10 + $0x10] sm:$0xff]
    %v509 = vld [vmem:[#allocation10 + $0x18] sm:$0xff]
    %v510 = vld [vmem:[#allocation10 + $0x20] sm:$0xff]
    %v511 = vld [vmem:[#allocation10 + $0x28] sm:$0xff]
    %v512 = vld [vmem:[#allocation11] sm:$0xff]
    %v513 = vld [vmem:[#allocation11 + $0x8] sm:$0xff]
    %v514 = vld [vmem:[#allocation11 + $0x10] sm:$0xff]
    %v515 = vld [vmem:[#allocation11 + $0x18] sm:$0xff]
    %516 = vmatprep.subr.mxu0 0.0
    %517 = vmatpush1.msra.mxu0 %v512
    %518 = vmatprep.subr.mxu0 0.0
    %519 = vmatpush1.msra.mxu0 %v513
    %520 = vmatprep.subr.mxu0 0.0
    %521 = vmatpush1.msra.mxu0 %v514
    %522 = vmatprep.subr.mxu0 0.0
    %523 = vmatpush1.msra.mxu0 %v515
    %524 = vmatprep.subr.mxu0 0.0
    %525 = vmatpush1.msra.mxu0 0.0
    %526 = vmatprep.subr.mxu0 0.0
    %527 = vmatpush1.msra.mxu0 0.0
    %528 = vmatprep.subr.mxu0 0.0
    %529 = vmatpush1.msra.mxu0 0.0
    %530 = vmatprep.subr.mxu0 0.0
    %531 = vmatpush1.msra.mxu0 0.0
    %532 = vmatprep.subr.mxu0 0.0
    %533 = vmatpush1.msra.mxu0 0.0
    %534 = vmatprep.subr.mxu0 0.0
    %535 = vmatpush1.msra.mxu0 0.0
    %536 = vmatprep.subr.mxu0 0.0
    %537 = vmatpush1.msra.mxu0 0.0
    %538 = vmatprep.subr.mxu0 0.0
    %539 = vmatpush1.msra.mxu0 0.0
    %540 = vmatprep.subr.mxu0 0.0
    %541 = vmatpush1.msra.mxu0 0.0
    %542 = vmatprep.subr.mxu0 0.0
    %543 = vmatpush1.msra.mxu0 0.0
    %544 = vmatprep.subr.mxu0 0.0
    %545 = vmatpush1.msra.mxu0 0.0
    %546 = vmatprep.subr.mxu0 0.0
    %547 = vmatpush1.msra.mxu0 0.0
    %548 = vmatprep.subr.mxu0 0.0
    %549 = vmatpush1.msra.mxu0 0.0
    %550 = vmatprep.subr.mxu0 0.0
    %551 = vmatpush1.msra.mxu0 0.0
    %552 = vmatprep.subr.mxu0 0.0
    %553 = vmatpush1.msra.mxu0 0.0
    %554 = vmatprep.subr.mxu0 0.0
    %555 = vmatpush1.msra.mxu0 0.0
    %556 = vmatprep.subr.mxu0 0.0
    %557 = vmatpush1.msra.mxu0 0.0
    %558 = vmatprep.subr.mxu0 0.0
    %559 = vmatpush1.msra.mxu0 0.0
    %560 = vmatprep.subr.mxu0 0.0
    %561 = vmatpush1.msra.mxu0 0.0
    %562 = vmatprep.subr.mxu0 0.0
    %563 = vmatpush1.msra.mxu0 0.0
    %564 = vmatprep.subr.mxu0 0.0
    %565 = vmatpush1.msra.mxu0 0.0
    %566 = vmatprep.subr.mxu0 0.0
    %567 = vmatpush1.msra.mxu0 0.0
    %568 = vmatprep.subr.mxu0 0.0
    %569 = vmatpush1.msra.mxu0 0.0
    %570 = vmatprep.subr.mxu0 0.0
    %571 = vmatpush1.msra.mxu0 0.0
    %572 = vmatprep.subr.mxu0 0.0
    %573 = vmatpush1.msra.mxu0 0.0
    %574 = vmatprep.subr.mxu0 0.0
    %575 = vmatpush1.msra.mxu0 0.0
    %576 = vmatprep.subr.mxu0 0.0
    %577 = vmatpush1.msra.mxu0 0.0
    %578 = vmatprep.subr.mxu0 0.0
    %579 = vmatpush1.msra.mxu0 0.0
    %580 = vmatprep.mubr.f32.mxu0 0.0
    %581 = vmatmul.mubr.f32.gmra.mrb[0].mxu0 %v122
    %v582 = vpop.f32.mrb[0].mxu0
    %v583 = vadd.f32 0.0, %v582
    %v584 = vpop.f32.mrb[0].mxu0
    %585 = vdwg.mxu0
    %v594 = vsel %vm359, %v463, %v456
    %v595 = vsel %vm361, %v470, %v594
    %v596 = vsel %vm363, %v477, %v595
    %v597 = vsel %vm365, %v484, %v596
    %v598 = vsel %vm367, %v491, %v597
    %v599 = vsel %vm369, %v498, %v598
    %v600 = vsel %vm371, %v505, %v599
    %v601 = vsel %vm292, %v600, 0
    %603 = vmatprep.subr.mxu0 0.0
    %604 = vmatpush1.msra.mxu0 %v506
    %605 = vmatprep.subr.mxu0 0.0
    %606 = vmatpush1.msra.mxu0 %v507
    %607 = vmatprep.subr.mxu0 0.0
    %608 = vmatpush1.msra.mxu0 %v508
    %609 = vmatprep.subr.mxu0 0.0
    %610 = vmatpush1.msra.mxu0 %v509
    %611 = vmatprep.subr.mxu0 0.0
    %612 = vmatpush1.msra.mxu0 %v510
    %613 = vmatprep.subr.mxu0 0.0
    %614 = vmatpush1.msra.mxu0 %v511
    %615 = vmatprep.subr.mxu0 0.0
    %616 = vmatpush1.msra.mxu0 0.0
    %617 = vmatprep.subr.mxu0 0.0
    %618 = vmatpush1.msra.mxu0 0.0
    %619 = vmatprep.subr.mxu0 0.0
    %620 = vmatpush1.msra.mxu0 0.0
    %621 = vmatprep.subr.mxu0 0.0
    %622 = vmatpush1.msra.mxu0 0.0
    %623 = vmatprep.subr.mxu0 0.0
    %624 = vmatpush1.msra.mxu0 0.0
    %625 = vmatprep.subr.mxu0 0.0
    %626 = vmatpush1.msra.mxu0 0.0
    %627 = vmatprep.subr.mxu0 0.0
    %628 = vmatpush1.msra.mxu0 0.0
    %629 = vmatprep.subr.mxu0 0.0
    %630 = vmatpush1.msra.mxu0 0.0
    %631 = vmatprep.subr.mxu0 0.0
    %632 = vmatpush1.msra.mxu0 0.0
    %633 = vmatprep.subr.mxu0 0.0
    %634 = vmatpush1.msra.mxu0 0.0
    %635 = vmatprep.subr.mxu0 0.0
    %636 = vmatpush1.msra.mxu0 0.0
    %637 = vmatprep.subr.mxu0 0.0
    %638 = vmatpush1.msra.mxu0 0.0
    %639 = vmatprep.subr.mxu0 0.0
    %640 = vmatpush1.msra.mxu0 0.0
    %641 = vmatprep.subr.mxu0 0.0
    %642 = vmatpush1.msra.mxu0 0.0
    %643 = vmatprep.subr.mxu0 0.0
    %644 = vmatpush1.msra.mxu0 0.0
    %645 = vmatprep.subr.mxu0 0.0
    %646 = vmatpush1.msra.mxu0 0.0
    %647 = vmatprep.subr.mxu0 0.0
    %648 = vmatpush1.msra.mxu0 0.0
    %649 = vmatprep.subr.mxu0 0.0
    %650 = vmatpush1.msra.mxu0 0.0
    %651 = vmatprep.subr.mxu0 0.0
    %652 = vmatpush1.msra.mxu0 0.0
    %653 = vmatprep.subr.mxu0 0.0
    %654 = vmatpush1.msra.mxu0 0.0
    %655 = vmatprep.subr.mxu0 0.0
    %656 = vmatpush1.msra.mxu0 0.0
    %657 = vmatprep.subr.mxu0 0.0
    %658 = vmatpush1.msra.mxu0 0.0
    %659 = vmatprep.subr.mxu0 0.0
    %660 = vmatpush1.msra.mxu0 0.0
    %661 = vmatprep.subr.mxu0 0.0
    %662 = vmatpush1.msra.mxu0 0.0
    %663 = vmatprep.subr.mxu0 0.0
    %664 = vmatpush1.msra.mxu0 0.0
    %665 = vmatprep.subr.mxu0 0.0
    %666 = vmatpush1.msra.mxu0 0.0
    %667 = vmatprep.mubr.f32.mxu0 0.0
    %668 = vmatmul.mubr.f32.gmra.mrb[0].mxu0 %v601
    %v669 = vpop.f32.mrb[0].mxu0
    %v670 = vadd.f32 %v583, %v669
    %v671 = vpop.f32.mrb[0].mxu0
    %672 = vdwg.mxu0
    %v673 = vtanh.pop %v670
    %674 = vst [vmem:[#allocation13] sm:$0xff] %v673
    %675 = vst [vmem:[#allocation14] sm:$0xff] %v385
    // Predicated region
    $region50: #{tpu_custom_call.1} parent=1 // pred_check
      _
    $region51: #{tpu_custom_call.1} parent=1 // pred_check_branch
      %677 = sbr.rel (0) target = $region53
    $region52: #{tpu_custom_call.1} parent=1 // pred_region
      %s679 = ssub.s32 128, 128
      %680 = vsyncadd [#allocation4], %s679
      %s682 = sshll.u32 [#allocation13], 4
      %s683 = int_to_ptr.vmem [resolvable:$true] %s682
      %685 = dma.vmem_to_hbm [thread:$0]  %s683, 128, %s6, [#allocation4]
    $region53: #{tpu_custom_call.1} parent=1 // pred_fallthru
      _
    // Predicated region
    $region54: #{tpu_custom_call.1} parent=1 // pred_check
      _
    $region55: #{tpu_custom_call.1} parent=1 // pred_check_branch
      %687 = sbr.rel (0) target = $region57
    $region56: #{tpu_custom_call.1} parent=1 // pred_region
      %s689 = ssub.s32 128, 128
      %690 = vsyncadd [#allocation15], %s689
      %s692 = sshll.u32 [#allocation14], 4
      %s693 = int_to_ptr.vmem [resolvable:$true] %s692
      %695 = dma.vmem_to_hbm [thread:$0]  %s693, 128, %s7, [#allocation15]
    $region57: #{tpu_custom_call.1} parent=1 // pred_fallthru
      _
    // Predicated region
    $region58: #{tpu_custom_call.1} parent=1 // pred_check
      _
    $region59: #{tpu_custom_call.1} parent=1 // pred_check_branch
      %697 = sbr.rel (0) target = $region61
    $region60: #{tpu_custom_call.1} parent=1 // pred_region
      %698 = dma.done [#allocation4], 128
    $region61: #{tpu_custom_call.1} parent=1 // pred_fallthru
      _
    // Predicated region
    $region62: #{tpu_custom_call.1} parent=1 // pred_check
      _
    $region63: #{tpu_custom_call.1} parent=1 // pred_check_branch
      %700 = sbr.rel (0) target = $region65
    $region64: #{tpu_custom_call.1} parent=1 // pred_region
      %701 = dma.done [#allocation15], 128
    $region65: #{tpu_custom_call.1} parent=1 // pred_fallthru
      _
    %702 = vsyncpa [#allocation3], 1
    %703 = vsyncpa [#allocation6], 1
    %704 = vsyncpa [#allocation9], 1
    %705 = vsyncpa [#allocation12], 1
    %706 = vsyncpa [#allocation4], 1
    %707 = vsyncpa [#allocation15], 1

// kernel: tpu_custom_call.1
$region0: #{tpu_custom_call.1}
  #allocation0 [shape = 'u32[]', space=smem, size = 0x4, offset = 0x4, fixed_abs, tag = 'smem constant byte address 0x4 - core index']
  #allocation1 [shape = 'u32[144,128]{1,0:T(1,128)}', space=vmem, size = 0x12000, scoped, tag = 'internal scratch']
  %s0 = inlined_call_operand.hbm [shape: f32[8,32], index: 0, kind: input, shape index: {}]
  %s1 = inlined_call_operand.hbm [shape: f32[8,8,48], index: 1, kind: input, shape index: {}]
  %s2 = inlined_call_operand.hbm [shape: s32[8,8], index: 2, kind: input, shape index: {}]
  %s3 = inlined_call_operand.hbm [shape: f32[32,48], index: 3, kind: input, shape index: {}]
  %s4 = inlined_call_operand.hbm [shape: f32[48,128], index: 4, kind: input, shape index: {}]
  %s5 = inlined_call_operand.hbm [shape: f32[32,128], index: 5, kind: input, shape index: {}]
  %s6 = inlined_call_operand.hbm [shape: f32[8,128], index: 6, kind: output, shape index: {0}]
  %s7 = inlined_call_operand.hbm [shape: f32[8,128], index: 7, kind: output, shape index: {1}]
  %8 = xla_tuple %s6, %s7
  %s9 = sld [smem:[#allocation0]]
  $region66: #{tpu_custom_call.1} parent=0
    _
  %s11 = ssub.s32 1, %s9
  %s12 = scalar_select 0, %s11, %s9
  $region1: #{tpu_custom_call.1} parent=0
    #allocation2 [shape = 'u8[4096]{0}', space=vmem, size = 0x1000, scoped, tag = 'input window, operand 0, single buffered']
    #allocation3 [shape = 's32[1]{0}', space=sflag, size = 0x4, scoped, tag = 'scoped memory for tpu_custom_call.1']
    #allocation4 [shape = 's32[1]{0}', space=sflag, size = 0x4, scoped, tag = 'scoped memory for tpu_custom_call.1']
    #allocation5 [shape = 'u8[32768]{0}', space=vmem, size = 0x8000, scoped, tag = 'input window, operand 1, single buffered']
    #allocation6 [shape = 's32[1]{0}', space=sflag, size = 0x4, scoped, tag = 'scoped memory for tpu_custom_call.1']
    #allocation7 [shape = 'u8[4096]{0}', space=vmem, size = 0x1000, scoped, tag = 'input window, operand 2, single buffered']
    #allocation8 [shape = 'u8[16384]{0}', space=vmem, size = 0x4000, scoped, tag = 'input window, operand 3, single buffered']
    #allocation9 [shape = 's32[1]{0}', space=sflag, size = 0x4, scoped, tag = 'scoped memory for tpu_custom_call.1']
    #allocation10 [shape = 'u8[24576]{0}', space=vmem, size = 0x6000, scoped, tag = 'input window, operand 4, single buffered']
    #allocation11 [shape = 'u8[16384]{0}', space=vmem, size = 0x4000, scoped, tag = 'input window, operand 5, single buffered']
    #allocation12 [shape = 's32[1]{0}', space=sflag, size = 0x4, scoped, tag = 'scoped memory for tpu_custom_call.1']
    #allocation13 [shape = 'u8[4096]{0}', space=vmem, size = 0x1000, scoped, tag = 'output window, operand 0, single buffered']
    #allocation14 [shape = 'u8[4096]{0}', space=vmem, size = 0x1000, scoped, tag = 'output window, operand 1, single buffered']
    #allocation15 [shape = 's32[1]{0}', space=sflag, size = 0x4, scoped, tag = 'scoped memory for tpu_custom_call.1']
    %13 = vsyncpa [#allocation3], 0
    %14 = vsyncpa [#allocation6], 0
    %15 = vsyncpa [#allocation9], 0
    %16 = vsyncpa [#allocation12], 0
    %17 = vsyncpa [#allocation4], 0
    %18 = vsyncpa [#allocation15], 0
    // Predicated region
    $region2: #{tpu_custom_call.1} parent=1 // pred_check
      _
    $region3: #{tpu_custom_call.1} parent=1 // pred_check_branch
      %20 = sbr.rel (0) target = $region5
    $region4: #{tpu_custom_call.1} parent=1 // pred_region
      %s22 = ssub.s32 128, 128
      %23 = vsyncadd [#allocation3], %s22
      %s25 = sshll.u32 [#allocation2], 4
      %s26 = int_to_ptr.vmem [resolvable:$true] %s25
      %28 = dma.hbm_to_vmem [thread:$0]  %s0, 128, %s26, [#allocation3]
    $region5: #{tpu_custom_call.1} parent=1 // pred_fallthru
      _
    // Predicated region
    $region6: #{tpu_custom_call.1} parent=1 // pred_check
      _
    $region7: #{tpu_custom_call.1} parent=1 // pred_check_branch
      %30 = sbr.rel (0) target = $region9
    $region8: #{tpu_custom_call.1} parent=1 // pred_region
      %s32 = ssub.s32 1024, 1024
      %33 = vsyncadd [#allocation6], %s32
      %s34 = sshll.u32 [#allocation5], 4
      %s35 = int_to_ptr.vmem [resolvable:$true] %s34
      %40 = dma.hbm_to_vmem [thread:$0]  %s1, 1024, %s35, [#allocation6], 128, 128, 8
    $region9: #{tpu_custom_call.1} parent=1 // pred_fallthru
      _
    // Predicated region
    $region10: #{tpu_custom_call.1} parent=1 // pred_check
      _
    $region11: #{tpu_custom_call.1} parent=1 // pred_check_branch
      %42 = sbr.rel (0) target = $region13
    $region12: #{tpu_custom_call.1} parent=1 // pred_region
      %s44 = ssub.s32 128, 128
      %45 = vsyncadd [#allocation6], %s44
      %s47 = sshll.u32 [#allocation7], 4
      %s48 = int_to_ptr.vmem [resolvable:$true] %s47
      %50 = dma.hbm_to_vmem [thread:$0]  %s2, 128, %s48, [#allocation6]
    $region13: #{tpu_custom_call.1} parent=1 // pred_fallthru
      _
    // Predicated region
    $region14: #{tpu_custom_call.1} parent=1 // pred_check
      _
    $region15: #{tpu_custom_call.1} parent=1 // pred_check_branch
      %52 = sbr.rel (0) target = $region17
    $region16: #{tpu_custom_call.1} parent=1 // pred_region
      %s54 = ssub.s32 512, 512
      %55 = vsyncadd [#allocation9], %s54
      %s56 = sshll.u32 [#allocation8], 4
      %s57 = int_to_ptr.vmem [resolvable:$true] %s56
      %62 = dma.hbm_to_vmem [thread:$0]  %s3, 512, %s57, [#allocation9], 128, 128, 8
    $region17: #{tpu_custom_call.1} parent=1 // pred_fallthru
      _
    // Predicated region
    $region18: #{tpu_custom_call.1} parent=1 // pred_check
      _
    $region19: #{tpu_custom_call.1} parent=1 // pred_check_branch
      %64 = sbr.rel (0) target = $region21
    $region20: #{tpu_custom_call.1} parent=1 // pred_region
      %s66 = ssub.s32 768, 768
      %67 = vsyncadd [#allocation9], %s66
      %s68 = sshll.u32 [#allocation10], 4
      %s69 = int_to_ptr.vmem [resolvable:$true] %s68
      %74 = dma.hbm_to_vmem [thread:$0]  %s4, 768, %s69, [#allocation9], 128, 128, 8
    $region21: #{tpu_custom_call.1} parent=1 // pred_fallthru
      _
    // Predicated region
    $region22: #{tpu_custom_call.1} parent=1 // pred_check
      _
    $region23: #{tpu_custom_call.1} parent=1 // pred_check_branch
      %76 = sbr.rel (0) target = $region25
    $region24: #{tpu_custom_call.1} parent=1 // pred_region
      %s78 = ssub.s32 512, 512
      %79 = vsyncadd [#allocation12], %s78
      %s80 = sshll.u32 [#allocation11], 4
      %s81 = int_to_ptr.vmem [resolvable:$true] %s80
      %86 = dma.hbm_to_vmem [thread:$0]  %s5, 512, %s81, [#allocation12], 128, 128, 8
    $region25: #{tpu_custom_call.1} parent=1 // pred_fallthru
      _
    // Predicated region
    $region26: #{tpu_custom_call.1} parent=1 // pred_check
      _
    $region27: #{tpu_custom_call.1} parent=1 // pred_check_branch
      %88 = sbr.rel (0) target = $region29
    $region28: #{tpu_custom_call.1} parent=1 // pred_region
      %89 = dma.done [#allocation3], 128
    $region29: #{tpu_custom_call.1} parent=1 // pred_fallthru
      _
    // Predicated region
    $region30: #{tpu_custom_call.1} parent=1 // pred_check
      _
    $region31: #{tpu_custom_call.1} parent=1 // pred_check_branch
      %91 = sbr.rel (0) target = $region33
    $region32: #{tpu_custom_call.1} parent=1 // pred_region
      %92 = dma.done [#allocation6], 1024
    $region33: #{tpu_custom_call.1} parent=1 // pred_fallthru
      _
    // Predicated region
    $region34: #{tpu_custom_call.1} parent=1 // pred_check
      _
    $region35: #{tpu_custom_call.1} parent=1 // pred_check_branch
      %94 = sbr.rel (0) target = $region37
    $region36: #{tpu_custom_call.1} parent=1 // pred_region
      %95 = dma.done [#allocation6], 128
    $region37: #{tpu_custom_call.1} parent=1 // pred_fallthru
      _
    // Predicated region
    $region38: #{tpu_custom_call.1} parent=1 // pred_check
      _
    $region39: #{tpu_custom_call.1} parent=1 // pred_check_branch
      %97 = sbr.rel (0) target = $region41
    $region40: #{tpu_custom_call.1} parent=1 // pred_region
      %98 = dma.done [#allocation9], 512
    $region41: #{tpu_custom_call.1} parent=1 // pred_fallthru
      _
    // Predicated region
    $region42: #{tpu_custom_call.1} parent=1 // pred_check
      _
    $region43: #{tpu_custom_call.1} parent=1 // pred_check_branch
      %100 = sbr.rel (0) target = $region45
    $region44: #{tpu_custom_call.1} parent=1 // pred_region
      %101 = dma.done [#allocation9], 768
    $region45: #{tpu_custom_call.1} parent=1 // pred_fallthru
      _
    // Predicated region
    $region46: #{tpu_custom_call.1} parent=1 // pred_check
      _
    $region47: #{tpu_custom_call.1} parent=1 // pred_check_branch
      %103 = sbr.rel (0) target = $region49
    $region48: #{tpu_custom_call.1} parent=1 // pred_region
      %104 = dma.done [#allocation12], 512
    $region49: #{tpu_custom_call.1} parent=1 // pred_fallthru
      _
    %v105 = vld [vmem:[#allocation2] sm:$0xff]
    %v106 = vld [vmem:[#allocation5] sm:$0xff]
    %v107 = vld [vmem:[#allocation5 + $0x8] sm:$0xff]
    %v108 = vld [vmem:[#allocation5 + $0x10] sm:$0xff]
    %v109 = vld [vmem:[#allocation5 + $0x18] sm:$0xff]
    %v110 = vld [vmem:[#allocation5 + $0x20] sm:$0xff]
    %v111 = vld [vmem:[#allocation5 + $0x28] sm:$0xff]
    %v112 = vld [vmem:[#allocation5 + $0x30] sm:$0xff]
    %v113 = vld [vmem:[#allocation5 + $0x38] sm:$0xff]
    %v114 = vld [vmem:[#allocation7] sm:$0xff]
    %vm115 = vcmp.ne.s32.totalorder %v114, 0
    %v116 = vld [vmem:[#allocation8] sm:$0xff]
    %v117 = vld [vmem:[#allocation8 + $0x8] sm:$0xff]
    %v118 = vld [vmem:[#allocation8 + $0x10] sm:$0xff]
    %v119 = vld [vmem:[#allocation8 + $0x18] sm:$0xff]
    %vm120 = vcmask 261120
    %v122 = vsel %vm120, %v105, 0
    %124 = vmatprep.subr.mxu0 0.0
    %125 = vmatpush1.msra.mxu0 %v116
    %126 = vmatprep.subr.mxu0 0.0
    %127 = vmatpush1.msra.mxu0 %v117
    %128 = vmatprep.subr.mxu0 0.0
    %129 = vmatpush1.msra.mxu0 %v118
    %130 = vmatprep.subr.mxu0 0.0
    %131 = vmatpush1.msra.mxu0 %v119
    %132 = vmatprep.subr.mxu0 0.0
    %133 = vmatpush1.msra.mxu0 0.0
    %134 = vmatprep.subr.mxu0 0.0
    %135 = vmatpush1.msra.mxu0 0.0
    %136 = vmatprep.subr.mxu0 0.0
    %137 = vmatpush1.msra.mxu0 0.0
    %138 = vmatprep.subr.mxu0 0.0
    %139 = vmatpush1.msra.mxu0 0.0
    %140 = vmatprep.subr.mxu0 0.0
    %141 = vmatpush1.msra.mxu0 0.0
    %142 = vmatprep.subr.mxu0 0.0
    %143 = vmatpush1.msra.mxu0 0.0
    %144 = vmatprep.subr.mxu0 0.0
    %145 = vmatpush1.msra.mxu0 0.0
    %146 = vmatprep.subr.mxu0 0.0
    %147 = vmatpush1.msra.mxu0 0.0
    %148 = vmatprep.subr.mxu0 0.0
    %149 = vmatpush1.msra.mxu0 0.0
    %150 = vmatprep.subr.mxu0 0.0
    %151 = vmatpush1.msra.mxu0 0.0
    %152 = vmatprep.subr.mxu0 0.0
    %153 = vmatpush1.msra.mxu0 0.0
    %154 = vmatprep.subr.mxu0 0.0
    %155 = vmatpush1.msra.mxu0 0.0
    %156 = vmatprep.subr.mxu0 0.0
    %157 = vmatpush1.msra.mxu0 0.0
    %158 = vmatprep.subr.mxu0 0.0
    %159 = vmatpush1.msra.mxu0 0.0
    %160 = vmatprep.subr.mxu0 0.0
    %161 = vmatpush1.msra.mxu0 0.0
    %162 = vmatprep.subr.mxu0 0.0
    %163 = vmatpush1.msra.mxu0 0.0
    %164 = vmatprep.subr.mxu0 0.0
    %165 = vmatpush1.msra.mxu0 0.0
    %166 = vmatprep.subr.mxu0 0.0
    %167 = vmatpush1.msra.mxu0 0.0
    %168 = vmatprep.subr.mxu0 0.0
    %169 = vmatpush1.msra.mxu0 0.0
    %170 = vmatprep.subr.mxu0 0.0
    %171 = vmatpush1.msra.mxu0 0.0
    %172 = vmatprep.subr.mxu0 0.0
    %173 = vmatpush1.msra.mxu0 0.0
    %174 = vmatprep.subr.mxu0 0.0
    %175 = vmatpush1.msra.mxu0 0.0
    %176 = vmatprep.subr.mxu0 0.0
    %177 = vmatpush1.msra.mxu0 0.0
    %178 = vmatprep.subr.mxu0 0.0
    %179 = vmatpush1.msra.mxu0 0.0
    %180 = vmatprep.subr.mxu0 0.0
    %181 = vmatpush1.msra.mxu0 0.0
    %182 = vmatprep.subr.mxu0 0.0
    %183 = vmatpush1.msra.mxu0 0.0
    %184 = vmatprep.subr.mxu0 0.0
    %185 = vmatpush1.msra.mxu0 0.0
    %186 = vmatprep.subr.mxu0 0.0
    %187 = vmatpush1.msra.mxu0 0.0
    %188 = vmatprep.mubr.f32.mxu0 0.0
    %189 = vmatmul.mubr.f32.gmra.mrb[0].mxu0 %v122
    %v190 = vpop.f32.mrb[0].mxu0
    %v191 = vadd.f32 0.0, %v190
    %v192 = vpop.f32.mrb[0].mxu0
    %193 = vdwg.mxu0
    %v195 = vcombine.high %v191, %v191
    %v197 = vunpack.c.l.s4 1966171168
    %v198 = vunpack.c.0.s8 %v197
    %v199 = vlaneseq
    %v200 = vshrl.u32 %v199, 7
    %v201 = vsub.s32 %v198, %v200
    %v202 = vrot.slane %v191, %v201
    %v204 = vunpack.c.l.s4 1966171168
    %v205 = vunpack.c.0.s8 %v204
    %v206 = vlaneseq
    %v207 = vshrl.u32 %v206, 7
    %v208 = vsub.s32 %v205, %v207
    %v209 = vrot.slane %v195, %v208
    %v210 = vcombine.high %v202, %v202
    %v211 = vcombine.high %v209, %v209
    %v213 = vunpack.c.l.s4 1966171168
    %v214 = vunpack.c.0.s8 %v213
    %v215 = vlaneseq
    %v216 = vshrl.u32 %v215, 7
    %v217 = vsub.s32 %v214, %v216
    %v218 = vrot.slane %v202, %v217
    %v220 = vunpack.c.l.s4 1966171168
    %v221 = vunpack.c.0.s8 %v220
    %v222 = vlaneseq
    %v223 = vshrl.u32 %v222, 7
    %v224 = vsub.s32 %v221, %v223
    %v225 = vrot.slane %v209, %v224
    %v227 = vunpack.c.l.s4 1966171168
    %v228 = vunpack.c.0.s8 %v227
    %v229 = vlaneseq
    %v230 = vshrl.u32 %v229, 7
    %v231 = vsub.s32 %v228, %v230
    %v232 = vrot.slane %v210, %v231
    %v234 = vunpack.c.l.s4 1966171168
    %v235 = vunpack.c.0.s8 %v234
    %v236 = vlaneseq
    %v237 = vshrl.u32 %v236, 7
    %v238 = vsub.s32 %v235, %v237
    %v239 = vrot.slane %v211, %v238
    %v240 = vcombine.high %v218, %v218
    %v241 = vcombine.high %v225, %v225
    %v242 = vcombine.high %v232, %v232
    %v243 = vcombine.high %v239, %v239
    %v244 = vlaneseq
    %v245 = vshrl.u32 %v244, 7
    %v246 = vsub.s32 0, %v245
    %v247 = vrot.slane %v218, %v246
    %v248 = vlaneseq
    %v249 = vshrl.u32 %v248, 7
    %v250 = vsub.s32 0, %v249
    %v251 = vrot.slane %v232, %v250
    %v252 = vlaneseq
    %v253 = vshrl.u32 %v252, 7
    %v254 = vsub.s32 0, %v253
    %v255 = vrot.slane %v240, %v254
    %v256 = vlaneseq
    %v257 = vshrl.u32 %v256, 7
    %v258 = vsub.s32 0, %v257
    %v259 = vrot.slane %v242, %v258
    %v260 = vlaneseq
    %v261 = vshrl.u32 %v260, 7
    %v262 = vsub.s32 0, %v261
    %v263 = vrot.slane %v225, %v262
    %v264 = vlaneseq
    %v265 = vshrl.u32 %v264, 7
    %v266 = vsub.s32 0, %v265
    %v267 = vrot.slane %v239, %v266
    %v268 = vlaneseq
    %v269 = vshrl.u32 %v268, 7
    %v270 = vsub.s32 0, %v269
    %v271 = vrot.slane %v241, %v270
    %v272 = vlaneseq
    %v273 = vshrl.u32 %v272, 7
    %v274 = vsub.s32 0, %v273
    %v275 = vrot.slane %v243, %v274
    %v284 = vmul.f32 %v106, %v247
    %v285 = vmul.f32 %v107, %v251
    %v286 = vmul.f32 %v108, %v255
    %v287 = vmul.f32 %v109, %v259
    %v288 = vmul.f32 %v110, %v263
    %v289 = vmul.f32 %v111, %v267
    %v290 = vmul.f32 %v112, %v271
    %v291 = vmul.f32 %v113, %v275
    %vm292 = vcmask 392192
    %v293 = vsel %vm292, %v284, 0.0
    %294 = vadd.xlane.f32.xlu0 %v293
    %v295 = vpop.xlane.xlu0 %294
    %v296 = vsel %vm292, %v285, 0.0
    %297 = vadd.xlane.f32.xlu0 %v296
    %v298 = vpop.xlane.xlu0 %297
    %v299 = vsel %vm292, %v286, 0.0
    %300 = vadd.xlane.f32.xlu0 %v299
    %v301 = vpop.xlane.xlu0 %300
    %v302 = vsel %vm292, %v287, 0.0
    %303 = vadd.xlane.f32.xlu0 %v302
    %v304 = vpop.xlane.xlu0 %303
    %v305 = vsel %vm292, %v288, 0.0
    %306 = vadd.xlane.f32.xlu0 %v305
    %v307 = vpop.xlane.xlu0 %306
    %v308 = vsel %vm292, %v289, 0.0
    %309 = vadd.xlane.f32.xlu0 %v308
    %v310 = vpop.xlane.xlu0 %309
    %v311 = vsel %vm292, %v290, 0.0
    %312 = vadd.xlane.f32.xlu0 %v311
    %v313 = vpop.xlane.xlu0 %312
    %v314 = vsel %vm292, %v291, 0.0
    %315 = vadd.xlane.f32.xlu0 %v314
    %v316 = vpop.xlane.xlu0 %315
    %v325 = vlaneseq
    %v326 = vand.u32 %v325, 127
    %v327 = vlaneseq
    %v328 = vshrl.u32 %v327, 7
    %v329 = vsub.s32 %v326, %v328
    %v330 = vrot.slane %v295, %v329
    %v331 = vlaneseq
    %v332 = vshrl.u32 %v331, 7
    %v333 = vsub.s32 %v326, %v332
    %v334 = vrot.slane %v298, %v333
    %v335 = vlaneseq
    %v336 = vshrl.u32 %v335, 7
    %v337 = vsub.s32 %v326, %v336
    %v338 = vrot.slane %v301, %v337
    %v339 = vlaneseq
    %v340 = vshrl.u32 %v339, 7
    %v341 = vsub.s32 %v326, %v340
    %v342 = vrot.slane %v304, %v341
    %v343 = vlaneseq
    %v344 = vshrl.u32 %v343, 7
    %v345 = vsub.s32 %v326, %v344
    %v346 = vrot.slane %v307, %v345
    %v347 = vlaneseq
    %v348 = vshrl.u32 %v347, 7
    %v349 = vsub.s32 %v326, %v348
    %v350 = vrot.slane %v310, %v349
    %v351 = vlaneseq
    %v352 = vshrl.u32 %v351, 7
    %v353 = vsub.s32 %v326, %v352
    %v354 = vrot.slane %v313, %v353
    %v355 = vlaneseq
    %v356 = vshrl.u32 %v355, 7
    %v357 = vsub.s32 %v326, %v356
    %v358 = vrot.slane %v316, %v357
    %vm359 = vcmask 1041409
    %v360 = vsel %vm359, %v334, %v330
    %vm361 = vcmask 1042434
    %v362 = vsel %vm361, %v338, %v360
    %vm363 = vcmask 1043459
    %v364 = vsel %vm363, %v342, %v362
    %vm365 = vcmask 1044484
    %v366 = vsel %vm365, %v346, %v364
    %vm367 = vcmask 1045509
    %v368 = vsel %vm367, %v350, %v366
    %vm369 = vcmask 1046534
    %v370 = vsel %vm369, %v354, %v368
    %vm371 = vcmask 1047559
    %v372 = vsel %vm371, %v358, %v370
    %v374 = vsel %vm115, -1e+30, %v372
    %vm375 = vcmask 64512
    %v376 = vsel %vm375, %v374, -1e+30
    %377 = vmax.xlane.f32.xlu0 %v376
    %v378 = vpop.xlane.xlu0 %377
    %v379 = vsub.f32 %v376, %v378
    %v380 = vmul.f32 %v379, 1.442695
    %v381 = vpow.pop %v380
    %382 = vadd.xlane.f32.xlu0 %v381
    %v383 = vpop.xlane.xlu0 %382
    %v384 = vrcp.pop %v383
    %v385 = vmul.f32 %v381, %v384
    %v386 = vlaneseq
    %v387 = vshrl.u32 %v386, 7
    %v388 = vsub.s32 0, %v387
    %v389 = vrot.slane %v385, %v388
    %391 = vbcast.lane.b32.xlu0 %v389, 256
    %v392 = vpop.permute.xlu0 %391
    %v393 = vlaneseq
    %v394 = vshrl.u32 %v393, 7
    %v395 = vsub.s32 1, %v394
    %v396 = vrot.slane %v385, %v395
    %398 = vbcast.lane.b32.xlu0 %v396, 256
    %v399 = vpop.permute.xlu0 %398
    %v400 = vlaneseq
    %v401 = vshrl.u32 %v400, 7
    %v402 = vsub.s32 2, %v401
    %v403 = vrot.slane %v385, %v402
    %405 = vbcast.lane.b32.xlu0 %v403, 256
    %v406 = vpop.permute.xlu0 %405
    %v407 = vlaneseq
    %v408 = vshrl.u32 %v407, 7
    %v409 = vsub.s32 3, %v408
    %v410 = vrot.slane %v385, %v409
    %412 = vbcast.lane.b32.xlu0 %v410, 256
    %v413 = vpop.permute.xlu0 %412
    %v414 = vlaneseq
    %v415 = vshrl.u32 %v414, 7
    %v416 = vsub.s32 4, %v415
    %v417 = vrot.slane %v385, %v416
    %419 = vbcast.lane.b32.xlu0 %v417, 256
    %v420 = vpop.permute.xlu0 %419
    %v421 = vlaneseq
    %v422 = vshrl.u32 %v421, 7
    %v423 = vsub.s32 5, %v422
    %v424 = vrot.slane %v385, %v423
    %426 = vbcast.lane.b32.xlu0 %v424, 256
    %v427 = vpop.permute.xlu0 %426
    %v428 = vlaneseq
    %v429 = vshrl.u32 %v428, 7
    %v430 = vsub.s32 6, %v429
    %v431 = vrot.slane %v385, %v430
    %433 = vbcast.lane.b32.xlu0 %v431, 256
    %v434 = vpop.permute.xlu0 %433
    %v435 = vlaneseq
    %v436 = vshrl.u32 %v435, 7
    %v437 = vsub.s32 7, %v436
    %v438 = vrot.slane %v385, %v437
    %440 = vbcast.lane.b32.xlu0 %v438, 256
    %v441 = vpop.permute.xlu0 %440
    %v442 = vmul.f32 %v106, %v392
    %v443 = vmul.f32 %v107, %v399
    %v444 = vmul.f32 %v108, %v406
    %v445 = vmul.f32 %v109, %v413
    %v446 = vmul.f32 %v110, %v420
    %v447 = vmul.f32 %v111, %v427
    %v448 = vmul.f32 %v112, %v434
    %v449 = vmul.f32 %v113, %v441
    %v450 = vsel %vm292, %v442, 0.0
    %v451 = vrot.slane %v450, 4
    %v452 = vadd.f32 %v450, %v451
    %v453 = vrot.slane %v452, 2
    %v454 = vadd.f32 %v452, %v453
    %v455 = vrot.slane %v454, 1
    %v456 = vadd.f32 %v454, %v455
    %v457 = vsel %vm292, %v443, 0.0
    %v458 = vrot.slane %v457, 4
    %v459 = vadd.f32 %v457, %v458
    %v460 = vrot.slane %v459, 2
    %v461 = vadd.f32 %v459, %v460
    %v462 = vrot.slane %v461, 1
    %v463 = vadd.f32 %v461, %v462
    %v464 = vsel %vm292, %v444, 0.0
    %v465 = vrot.slane %v464, 4
    %v466 = vadd.f32 %v464, %v465
    %v467 = vrot.slane %v466, 2
    %v468 = vadd.f32 %v466, %v467
    %v469 = vrot.slane %v468, 1
    %v470 = vadd.f32 %v468, %v469
    %v471 = vsel %vm292, %v445, 0.0
    %v472 = vrot.slane %v471, 4
    %v473 = vadd.f32 %v471, %v472
    %v474 = vrot.slane %v473, 2
    %v475 = vadd.f32 %v473, %v474
    %v476 = vrot.slane %v475, 1
    %v477 = vadd.f32 %v475, %v476
    %v478 = vsel %vm292, %v446, 0.0
    %v479 = vrot.slane %v478, 4
    %v480 = vadd.f32 %v478, %v479
    %v481 = vrot.slane %v480, 2
    %v482 = vadd.f32 %v480, %v481
    %v483 = vrot.slane %v482, 1
    %v484 = vadd.f32 %v482, %v483
    %v485 = vsel %vm292, %v447, 0.0
    %v486 = vrot.slane %v485, 4
    %v487 = vadd.f32 %v485, %v486
    %v488 = vrot.slane %v487, 2
    %v489 = vadd.f32 %v487, %v488
    %v490 = vrot.slane %v489, 1
    %v491 = vadd.f32 %v489, %v490
    %v492 = vsel %vm292, %v448, 0.0
    %v493 = vrot.slane %v492, 4
    %v494 = vadd.f32 %v492, %v493
    %v495 = vrot.slane %v494, 2
    %v496 = vadd.f32 %v494, %v495
    %v497 = vrot.slane %v496, 1
    %v498 = vadd.f32 %v496, %v497
    %v499 = vsel %vm292, %v449, 0.0
    %v500 = vrot.slane %v499, 4
    %v501 = vadd.f32 %v499, %v500
    %v502 = vrot.slane %v501, 2
    %v503 = vadd.f32 %v501, %v502
    %v504 = vrot.slane %v503, 1
    %v505 = vadd.f32 %v503, %v504
    %v506 = vld [vmem:[#allocation10] sm:$0xff]
    %v507 = vld [vmem:[#allocation10 + $0x8] sm:$0xff]
    %v508 = vld [vmem:[#allocation10 + $0x10] sm:$0xff]
    %v509 = vld [vmem:[#allocation10 + $0x18] sm:$0xff]
    %v510 = vld [vmem:[#allocation10 + $0x20] sm:$0xff]
    %v511 = vld [vmem:[#allocation10 + $0x28] sm:$0xff]
    %v512 = vld [vmem:[#allocation11] sm:$0xff]
    %v513 = vld [vmem:[#allocation11 + $0x8] sm:$0xff]
    %v514 = vld [vmem:[#allocation11 + $0x10] sm:$0xff]
    %v515 = vld [vmem:[#allocation11 + $0x18] sm:$0xff]
    %516 = vmatprep.subr.mxu0 0.0
    %517 = vmatpush1.msra.mxu0 %v512
    %518 = vmatprep.subr.mxu0 0.0
    %519 = vmatpush1.msra.mxu0 %v513
    %520 = vmatprep.subr.mxu0 0.0
    %521 = vmatpush1.msra.mxu0 %v514
    %522 = vmatprep.subr.mxu0 0.0
    %523 = vmatpush1.msra.mxu0 %v515
    %524 = vmatprep.subr.mxu0 0.0
    %525 = vmatpush1.msra.mxu0 0.0
    %526 = vmatprep.subr.mxu0 0.0
    %527 = vmatpush1.msra.mxu0 0.0
    %528 = vmatprep.subr.mxu0 0.0
    %529 = vmatpush1.msra.mxu0 0.0
    %530 = vmatprep.subr.mxu0 0.0
    %531 = vmatpush1.msra.mxu0 0.0
    %532 = vmatprep.subr.mxu0 0.0
    %533 = vmatpush1.msra.mxu0 0.0
    %534 = vmatprep.subr.mxu0 0.0
    %535 = vmatpush1.msra.mxu0 0.0
    %536 = vmatprep.subr.mxu0 0.0
    %537 = vmatpush1.msra.mxu0 0.0
    %538 = vmatprep.subr.mxu0 0.0
    %539 = vmatpush1.msra.mxu0 0.0
    %540 = vmatprep.subr.mxu0 0.0
    %541 = vmatpush1.msra.mxu0 0.0
    %542 = vmatprep.subr.mxu0 0.0
    %543 = vmatpush1.msra.mxu0 0.0
    %544 = vmatprep.subr.mxu0 0.0
    %545 = vmatpush1.msra.mxu0 0.0
    %546 = vmatprep.subr.mxu0 0.0
    %547 = vmatpush1.msra.mxu0 0.0
    %548 = vmatprep.subr.mxu0 0.0
    %549 = vmatpush1.msra.mxu0 0.0
    %550 = vmatprep.subr.mxu0 0.0
    %551 = vmatpush1.msra.mxu0 0.0
    %552 = vmatprep.subr.mxu0 0.0
    %553 = vmatpush1.msra.mxu0 0.0
    %554 = vmatprep.subr.mxu0 0.0
    %555 = vmatpush1.msra.mxu0 0.0
    %556 = vmatprep.subr.mxu0 0.0
    %557 = vmatpush1.msra.mxu0 0.0
    %558 = vmatprep.subr.mxu0 0.0
    %559 = vmatpush1.msra.mxu0 0.0
    %560 = vmatprep.subr.mxu0 0.0
    %561 = vmatpush1.msra.mxu0 0.0
    %562 = vmatprep.subr.mxu0 0.0
    %563 = vmatpush1.msra.mxu0 0.0
    %564 = vmatprep.subr.mxu0 0.0
    %565 = vmatpush1.msra.mxu0 0.0
    %566 = vmatprep.subr.mxu0 0.0
    %567 = vmatpush1.msra.mxu0 0.0
    %568 = vmatprep.subr.mxu0 0.0
    %569 = vmatpush1.msra.mxu0 0.0
    %570 = vmatprep.subr.mxu0 0.0
    %571 = vmatpush1.msra.mxu0 0.0
    %572 = vmatprep.subr.mxu0 0.0
    %573 = vmatpush1.msra.mxu0 0.0
    %574 = vmatprep.subr.mxu0 0.0
    %575 = vmatpush1.msra.mxu0 0.0
    %576 = vmatprep.subr.mxu0 0.0
    %577 = vmatpush1.msra.mxu0 0.0
    %578 = vmatprep.subr.mxu0 0.0
    %579 = vmatpush1.msra.mxu0 0.0
    %580 = vmatprep.mubr.f32.mxu0 0.0
    %581 = vmatmul.mubr.f32.gmra.mrb[0].mxu0 %v122
    %v582 = vpop.f32.mrb[0].mxu0
    %v583 = vadd.f32 0.0, %v582
    %v584 = vpop.f32.mrb[0].mxu0
    %585 = vdwg.mxu0
    %v594 = vsel %vm359, %v463, %v456
    %v595 = vsel %vm361, %v470, %v594
    %v596 = vsel %vm363, %v477, %v595
    %v597 = vsel %vm365, %v484, %v596
    %v598 = vsel %vm367, %v491, %v597
    %v599 = vsel %vm369, %v498, %v598
    %v600 = vsel %vm371, %v505, %v599
    %v601 = vsel %vm292, %v600, 0
    %603 = vmatprep.subr.mxu0 0.0
    %604 = vmatpush1.msra.mxu0 %v506
    %605 = vmatprep.subr.mxu0 0.0
    %606 = vmatpush1.msra.mxu0 %v507
    %607 = vmatprep.subr.mxu0 0.0
    %608 = vmatpush1.msra.mxu0 %v508
    %609 = vmatprep.subr.mxu0 0.0
    %610 = vmatpush1.msra.mxu0 %v509
    %611 = vmatprep.subr.mxu0 0.0
    %612 = vmatpush1.msra.mxu0 %v510
    %613 = vmatprep.subr.mxu0 0.0
    %614 = vmatpush1.msra.mxu0 %v511
    %615 = vmatprep.subr.mxu0 0.0
    %616 = vmatpush1.msra.mxu0 0.0
    %617 = vmatprep.subr.mxu0 0.0
    %618 = vmatpush1.msra.mxu0 0.0
    %619 = vmatprep.subr.mxu0 0.0
    %620 = vmatpush1.msra.mxu0 0.0
    %621 = vmatprep.subr.mxu0 0.0
    %622 = vmatpush1.msra.mxu0 0.0
    %623 = vmatprep.subr.mxu0 0.0
    %624 = vmatpush1.msra.mxu0 0.0
    %625 = vmatprep.subr.mxu0 0.0
    %626 = vmatpush1.msra.mxu0 0.0
    %627 = vmatprep.subr.mxu0 0.0
    %628 = vmatpush1.msra.mxu0 0.0
    %629 = vmatprep.subr.mxu0 0.0
    %630 = vmatpush1.msra.mxu0 0.0
    %631 = vmatprep.subr.mxu0 0.0
    %632 = vmatpush1.msra.mxu0 0.0
    %633 = vmatprep.subr.mxu0 0.0
    %634 = vmatpush1.msra.mxu0 0.0
    %635 = vmatprep.subr.mxu0 0.0
    %636 = vmatpush1.msra.mxu0 0.0
    %637 = vmatprep.subr.mxu0 0.0
    %638 = vmatpush1.msra.mxu0 0.0
    %639 = vmatprep.subr.mxu0 0.0
    %640 = vmatpush1.msra.mxu0 0.0
    %641 = vmatprep.subr.mxu0 0.0
    %642 = vmatpush1.msra.mxu0 0.0
    %643 = vmatprep.subr.mxu0 0.0
    %644 = vmatpush1.msra.mxu0 0.0
    %645 = vmatprep.subr.mxu0 0.0
    %646 = vmatpush1.msra.mxu0 0.0
    %647 = vmatprep.subr.mxu0 0.0
    %648 = vmatpush1.msra.mxu0 0.0
    %649 = vmatprep.subr.mxu0 0.0
    %650 = vmatpush1.msra.mxu0 0.0
    %651 = vmatprep.subr.mxu0 0.0
    %652 = vmatpush1.msra.mxu0 0.0
    %653 = vmatprep.subr.mxu0 0.0
    %654 = vmatpush1.msra.mxu0 0.0
    %655 = vmatprep.subr.mxu0 0.0
    %656 = vmatpush1.msra.mxu0 0.0
    %657 = vmatprep.subr.mxu0 0.0
    %658 = vmatpush1.msra.mxu0 0.0
    %659 = vmatprep.subr.mxu0 0.0
    %660 = vmatpush1.msra.mxu0 0.0
    %661 = vmatprep.subr.mxu0 0.0
    %662 = vmatpush1.msra.mxu0 0.0
    %663 = vmatprep.subr.mxu0 0.0
    %664 = vmatpush1.msra.mxu0 0.0
    %665 = vmatprep.subr.mxu0 0.0
    %666 = vmatpush1.msra.mxu0 0.0
    %667 = vmatprep.mubr.f32.mxu0 0.0
    %668 = vmatmul.mubr.f32.gmra.mrb[0].mxu0 %v601
    %v669 = vpop.f32.mrb[0].mxu0
    %v670 = vadd.f32 %v583, %v669
    %v671 = vpop.f32.mrb[0].mxu0
    %672 = vdwg.mxu0
    %v673 = vtanh.pop %v670
    %674 = vst [vmem:[#allocation13] sm:$0xff] %v673
    %675 = vst [vmem:[#allocation14] sm:$0xff] %v385
    // Predicated region
    $region50: #{tpu_custom_call.1} parent=1 // pred_check
      _
    $region51: #{tpu_custom_call.1} parent=1 // pred_check_branch
      %677 = sbr.rel (0) target = $region53
    $region52: #{tpu_custom_call.1} parent=1 // pred_region
      %s679 = ssub.s32 128, 128
      %680 = vsyncadd [#allocation4], %s679
      %s682 = sshll.u32 [#allocation13], 4
      %s683 = int_to_ptr.vmem [resolvable:$true] %s682
      %685 = dma.vmem_to_hbm [thread:$0]  %s683, 128, %s6, [#allocation4]
    $region53: #{tpu_custom_call.1} parent=1 // pred_fallthru
      _
    // Predicated region
    $region54: #{tpu_custom_call.1} parent=1 // pred_check
      _
    $region55: #{tpu_custom_call.1} parent=1 // pred_check_branch
      %687 = sbr.rel (0) target = $region57
    $region56: #{tpu_custom_call.1} parent=1 // pred_region
      %s689 = ssub.s32 128, 128
      %690 = vsyncadd [#allocation15], %s689
      %s692 = sshll.u32 [#allocation14], 4
      %s693 = int_to_ptr.vmem [resolvable:$true] %s692
      %695 = dma.vmem_to_hbm [thread:$0]  %s693, 128, %s7, [#allocation15]
    $region57: #{tpu_custom_call.1} parent=1 // pred_fallthru
      _
    // Predicated region
    $region58: #{tpu_custom_call.1} parent=1 // pred_check
      _
    $region59: #{tpu_custom_call.1} parent=1 // pred_check_branch
      %697 = sbr.rel (0) target = $region61
    $region60: #{tpu_custom_call.1} parent=1 // pred_region
      %698 = dma.done [#allocation4], 128
    $region61: #{tpu_custom_call.1} parent=1 // pred_fallthru
      _
    // Predicated region
    $region62: #{tpu_custom_call.1} parent=1 // pred_check
      _
    $region63: #{tpu_custom_call.1} parent=1 // pred_check_branch
      %700 = sbr.rel (0) target = $region65
    $region64: #{tpu_custom_call.1} parent=1 // pred_region
      %701 = dma.done [#allocation15], 128
    $region65: #{tpu_custom_call.1} parent=1 // pred_fallthru
      _
    %702 = vsyncpa [#allocation3], 1
    %703 = vsyncpa [#allocation6], 1
    %704 = vsyncpa [#allocation9], 1
    %705 = vsyncpa [#allocation12], 1
    %706 = vsyncpa [#allocation4], 1
    %707 = vsyncpa [#allocation15], 1

</llo_original>
